<compile_context>
chip_gen: v7x
topology: tpu7x:2x2x1
jax: 0.10.0
libtpu: 0.0.40
codegen_flags: <defaults>
</compile_context>

<pallas_src>
import functools

import jax
import jax.numpy as jnp
from jax import lax
from jax.experimental import pallas as pl
from jax.experimental.pallas import tpu as pltpu


# ---------------------------------------------------------------------------
# Kernels
# ---------------------------------------------------------------------------

def _tap_conv_kernel(x_ref, w_ref, b_ref, *out_refs, relu, with_sum, valid):
    """out = [relu](sum_k W[k] @ X[k] + b), optionally emitting per-channel sums.

    x_ref: (K, 1, Cin, tm)   K taps of one batch's spatial tile (lanes = spatial)
    w_ref: (Kw, Cout, Cin)   Kw == K (per-tap weights) or Kw == 1 (shared weight)
    b_ref: (Cout, 1)         folded BatchNorm bias
    out_refs[0]: (1, Cout, tm)
    out_refs[1]: (1, Cout, 1)  per-(batch, channel) running sum (if with_sum)
    """
    K = x_ref.shape[0]
    Kw = w_ref.shape[0]
    if Kw == 1:
        # Shared weight across taps (avg-pool shortcut): sum taps, one matmul.
        acc = x_ref[0, 0, :, :].astype(jnp.float32)
        for k in range(1, K):
            acc = acc + x_ref[k, 0, :, :].astype(jnp.float32)
        y = jnp.dot(w_ref[0].astype(jnp.float32), acc,
                    preferred_element_type=jnp.float32)
    else:
        y = jnp.dot(w_ref[0].astype(jnp.float32),
                    x_ref[0, 0, :, :].astype(jnp.float32),
                    preferred_element_type=jnp.float32)
        for k in range(1, K):
            y = y + jnp.dot(w_ref[k].astype(jnp.float32),
                            x_ref[k, 0, :, :].astype(jnp.float32),
                            preferred_element_type=jnp.float32)
    y = y + b_ref[...]
    if relu:
        y = jnp.maximum(y, 0.0)
    out_refs[0][0] = y.astype(out_refs[0].dtype)

    if with_sum:
        sum_ref = out_refs[1]
        i = pl.program_id(1)

        @pl.when(i == 0)
        def _():
            sum_ref[...] = jnp.zeros_like(sum_ref)

        if valid is not None:  # mask padded tail lanes out of the SE pool
            tm = y.shape[-1]
            lane = i * tm + lax.broadcasted_iota(jnp.int32, y.shape, 1)
            y = jnp.where(lane < valid, y, 0.0)
        sum_ref[0] += jnp.sum(y, axis=-1, keepdims=True)


def _gated_conv_residual_kernel(x_ref, g_ref, w_ref, b_ref, r_ref, o_ref):
    """out = relu(W @ (x * gate) + b + residual): conv3+bn3+SE-scale+add+relu."""
    xg = x_ref[0].astype(jnp.float32) * g_ref[0]
    y = jnp.dot(w_ref[...], xg, preferred_element_type=jnp.float32) + b_ref[...]
    o_ref[0] = jnp.maximum(y + r_ref[0].astype(jnp.float32), 0.0).astype(o_ref.dtype)


# ---------------------------------------------------------------------------
# Wrappers around pallas_call
# ---------------------------------------------------------------------------

def _pick_tile(L, cap=2048):
    """Spatial (lane-axis) tile: full row when it fits, else a 128-multiple."""
    if L <= cap:
        return L, L
    for t in range(cap, 127, -128):
        if L % t == 0:
            return t, L
    tm = 1024
    return tm, pl.cdiv(L, tm) * tm


def _tap_conv(xtaps, w, bias, *, relu, with_sum=False):
    """xtaps: (K, N, Cin, L); w: (Kw, Cout, Cin); bias: (Cout,) -> (N, Cout, L)."""
    K, N, Cin, L = xtaps.shape
    Kw, Cout, _ = w.shape
    tm, Lp = _pick_tile(L)
    if Lp != L:
        xtaps = jnp.pad(xtaps, ((0, 0), (0, 0), (0, 0), (0, Lp - L)))

    kernel = functools.partial(
        _tap_conv_kernel, relu=relu, with_sum=with_sum,
        valid=(L if (with_sum and Lp != L) else None))

    out_shape = [jax.ShapeDtypeStruct((N, Cout, Lp), jnp.float32)]
    out_specs = [pl.BlockSpec((1, Cout, tm), lambda b, i: (b, 0, i))]
    if with_sum:
        out_shape.append(jax.ShapeDtypeStruct((N, Cout, 1), jnp.float32))
        out_specs.append(pl.BlockSpec((1, Cout, 1), lambda b, i: (b, 0, 0)))

    outs = pl.pallas_call(
        kernel,
        out_shape=tuple(out_shape),
        grid_spec=pltpu.PrefetchScalarGridSpec(
            num_scalar_prefetch=0,
            grid=(N, Lp // tm),
            in_specs=[
                pl.BlockSpec((K, 1, Cin, tm), lambda b, i: (0, b, 0, i)),
                pl.BlockSpec((Kw, Cout, Cin), lambda b, i: (0, 0, 0)),
                pl.BlockSpec((Cout, 1), lambda b, i: (0, 0)),
            ],
            out_specs=tuple(out_specs),
        ),
        compiler_params=pltpu.CompilerParams(
            dimension_semantics=("parallel",
                                 "arbitrary" if with_sum else "parallel")),
    )(xtaps.astype(jnp.float32), w.astype(jnp.float32),
      bias.reshape(Cout, 1).astype(jnp.float32))

    y = outs[0][:, :, :L]
    if with_sum:
        return y, outs[1]
    return y


def _gated_conv_residual(x, gate, w, bias, res):
    """x,res: (N,C,L); gate: (N,C,1); w: (C,C); bias: (C,) -> relu(W@(x*gate)+b+res)."""
    N, C, L = x.shape
    tm, Lp = _pick_tile(L)
    if Lp != L:
        x = jnp.pad(x, ((0, 0), (0, 0), (0, Lp - L)))
        res = jnp.pad(res, ((0, 0), (0, 0), (0, Lp - L)))
    out = pl.pallas_call(
        _gated_conv_residual_kernel,
        out_shape=jax.ShapeDtypeStruct((N, C, Lp), jnp.float32),
        grid_spec=pltpu.PrefetchScalarGridSpec(
            num_scalar_prefetch=0,
            grid=(N, Lp // tm),
            in_specs=[
                pl.BlockSpec((1, C, tm), lambda b, i: (b, 0, i)),
                pl.BlockSpec((1, C, 1), lambda b, i: (b, 0, 0)),
                pl.BlockSpec((C, C), lambda b, i: (0, 0)),
                pl.BlockSpec((C, 1), lambda b, i: (0, 0)),
                pl.BlockSpec((1, C, tm), lambda b, i: (b, 0, i)),
            ],
            out_specs=pl.BlockSpec((1, C, tm), lambda b, i: (b, 0, i)),
        ),
        compiler_params=pltpu.CompilerParams(
            dimension_semantics=("parallel", "parallel")),
    )(x.astype(jnp.float32), gate.astype(jnp.float32), w.astype(jnp.float32),
      bias.reshape(C, 1).astype(jnp.float32), res.astype(jnp.float32))
    return out[:, :, :L]


# ---------------------------------------------------------------------------
# Parameter folding helpers
# ---------------------------------------------------------------------------

def _bn_fold(gamma, beta, mean, var, eps):
    scale = gamma.astype(jnp.float32) * lax.rsqrt(var.astype(jnp.float32) + eps)
    bias = beta.astype(jnp.float32) - mean.astype(jnp.float32) * scale
    return scale, bias


def _grouped_conv_dense_taps(w, group_width):
    """PyTorch grouped 3x3 weight (temp, group_width, 3, 3) -> dense (9, temp, temp)
    block-diagonal per-tap matrices laid out as dense[k, c_out, c_in]."""
    temp = w.shape[0]
    groups = temp // group_width
    w = w.astype(jnp.float32)
    dense = jnp.zeros((9, temp, temp), jnp.float32)
    for g in range(groups):
        blk = w[g * group_width:(g + 1) * group_width]        # (gw_out, gw_in, 3, 3)
        blk = jnp.transpose(blk, (2, 3, 0, 1)).reshape(9, group_width, group_width)
        dense = dense.at[:, g * group_width:(g + 1) * group_width,
                            g * group_width:(g + 1) * group_width].set(blk)
    return dense


# ---------------------------------------------------------------------------
# Full DBlock forward (eval-mode BatchNorm)
# ---------------------------------------------------------------------------

def dblock_forward(x, params, *, dilations, group_width, stride, eps=1e-5):
    """x: (N, Cin, H, W) NCHW float32. Returns (N, Cout, Ho, Wo) NCHW."""
    N, Cin, H, W = x.shape
    Cout = params["conv1_w"].shape[0]
    x32 = x.astype(jnp.float32)

    # ---- conv1 (1x1) + bn1 + relu -------------------------------------------
    s1, b1 = _bn_fold(params["bn1_gamma"], params["bn1_beta"],
                      params["bn1_mean"], params["bn1_var"], eps)
    w1 = params["conv1_w"].reshape(Cout, Cin).astype(jnp.float32) * s1[:, None]
    y1 = _tap_conv(x32.reshape(1, N, Cin, H * W), w1[None], b1, relu=True)
    y1_4d = y1.reshape(N, Cout, H, W)

    # ---- conv2 (3x3 grouped, per-split dilation, stride) + bn2 + relu --------
    # The grouped conv is expressed as 9 shifted taps x block-diagonal weights.
    # TODO(synk): fuse the 9-tap halo gather into the kernel via BlockSpec
    # index_maps instead of materializing shifted copies in HBM.
    Ho = (H - 1) // stride + 1
    Wo = (W - 1) // stride + 1
    num_splits = len(dilations)
    temp = Cout // num_splits
    taps = [[] for _ in range(9)]
    dense = jnp.zeros((9, Cout, Cout), jnp.float32)
    for si, d in enumerate(dilations):
        c0 = si * temp
        yp = jnp.pad(y1_4d[:, c0:c0 + temp], ((0, 0), (0, 0), (d, d), (d, d)))
        k = 0
        for ky in range(3):
            for kx in range(3):
                sl = yp[:, :, ky * d: ky * d + (Ho - 1) * stride + 1: stride,
                              kx * d: kx * d + (Wo - 1) * stride + 1: stride]
                taps[k].append(sl.reshape(N, temp, Ho * Wo))
                k += 1
        dense = dense.at[:, c0:c0 + temp, c0:c0 + temp].set(
            _grouped_conv_dense_taps(params["conv2_w"][si], group_width))
    xtaps2 = jnp.stack([jnp.concatenate(t, axis=1) for t in taps], axis=0)
    s2, b2 = _bn_fold(params["bn2_gamma"], params["bn2_beta"],
                      params["bn2_mean"], params["bn2_var"], eps)
    w2 = dense * s2[None, :, None]
    # SE global-average-pool channel sums are fused into this kernel (2nd out).
    y2, chan_sum = _tap_conv(xtaps2, w2, b2, relu=True, with_sum=True)

    # ---- SE gate: tiny FC->relu->FC->sigmoid on the pooled means (plain JAX) -
    if params.get("se_w1") is not None:
        w_se = params["se_w1"].shape[0]
        means = chan_sum[:, :, 0] * (1.0 / float(Ho * Wo))               # (N, Cout)
        fc1 = params["se_w1"].reshape(w_se, Cout).astype(jnp.float32)
        fc2 = params["se_w2"].reshape(Cout, w_se).astype(jnp.float32)
        z = jnp.maximum(jnp.dot(means, fc1.T, precision=lax.Precision.HIGHEST)
                        + params["se_b1"][None], 0.0)
        gate = jax.nn.sigmoid(jnp.dot(z, fc2.T, precision=lax.Precision.HIGHEST)
                              + params["se_b2"][None]).reshape(N, Cout, 1)
    else:
        gate = jnp.ones((N, Cout, 1), jnp.float32)

    # ---- shortcut -------------------------------------------------------------
    if stride != 1 or Cin != Cout:
        ss, bs = _bn_fold(params["sc_bn_gamma"], params["sc_bn_beta"],
                          params["sc_bn_mean"], params["sc_bn_var"], eps)
        wsc = params["sc_conv_w"].reshape(Cout, Cin).astype(jnp.float32) * ss[:, None]
        if stride != 1:
            # AvgPool2d(2,2,ceil_mode=True); even H/W assumed so ceil is a no-op.
            # TODO(synk): partial-window divisors for odd H/W (ceil_mode edge).
            assert H % 2 == 0 and W % 2 == 0, "odd spatial dims not supported"
            Hp, Wp = H // 2, W // 2
            sc_taps = jnp.stack(
                [x32[:, :, dy::2, dx::2].reshape(N, Cin, Hp * Wp)
                 for dy in (0, 1) for dx in (0, 1)], axis=0)          # (4, N, Cin, M)
            # 1/4 (pool divisor) and BN scale are folded into the weight.
            res = _tap_conv(sc_taps, (wsc * 0.25)[None], bs, relu=False)
        else:
            res = _tap_conv(x32.reshape(1, N, Cin, H * W), wsc[None], bs, relu=False)
    else:
        res = x32.reshape(N, Cout, H * W)

    # ---- conv3 (1x1) + bn3 + SE scaling + residual add + relu (one kernel) ----
    s3, b3 = _bn_fold(params["bn3_gamma"], params["bn3_beta"],
                      params["bn3_mean"], params["bn3_var"], eps)
    w3 = params["conv3_w"].reshape(Cout, Cout).astype(jnp.float32) * s3[:, None]
    out = _gated_conv_residual(y2, gate, w3, b3, res)
    return out.reshape(N, Cout, Ho, Wo)


# ---------------------------------------------------------------------------
# Pure-JAX reference (NCHW, eval-mode BN) for validation
# ---------------------------------------------------------------------------

def _reference_dblock(x, params, *, dilations, group_width, stride, eps=1e-5):
    hp = lax.Precision.HIGHEST

    def conv(lhs, w, s=1, padding=0, dil=1, groups=1):
        return lax.conv_general_dilated(
            lhs, w, (s, s), [(padding, padding)] * 2, rhs_dilation=(dil, dil),
            dimension_numbers=("NCHW", "OIHW", "NCHW"),
            feature_group_count=groups, precision=hp)

    def bn(y, pfx):
        s = params[pfx + "_gamma"] * lax.rsqrt(params[pfx + "_var"] + eps)
        return ((y - params[pfx + "_mean"][None, :, None, None])
                * s[None, :, None, None] + params[pfx + "_beta"][None, :, None, None])

    N, Cin, H, W = x.shape
    Cout = params["conv1_w"].shape[0]
    y = jnp.maximum(bn(conv(x, params["conv1_w"]), "bn1"), 0.0)

    num_splits = len(dilations)
    temp = Cout // num_splits
    pieces = []
    for si, d in enumerate(dilations):
        xs = y[:, si * temp:(si + 1) * temp]
        pieces.append(conv(xs, params["conv2_w"][si], s=stride, padding=d, dil=d,
                           groups=temp // group_width))
    y = jnp.maximum(bn(jnp.concatenate(pieces, axis=1), "bn2"), 0.0)

    if params.get("se_w1") is not None:
        w_se = params["se_w1"].shape[0]
        m = jnp.mean(y, axis=(2, 3))
        z = jnp.maximum(jnp.dot(m, params["se_w1"].reshape(w_se, Cout).T, precision=hp)
                        + params["se_b1"][None], 0.0)
        g = jax.nn.sigmoid(jnp.dot(z, params["se_w2"].reshape(Cout, w_se).T, precision=hp)
                           + params["se_b2"][None])
        y = y * g[:, :, None, None]

    y = bn(conv(y, params["conv3_w"]), "bn3")

    if stride != 1 or Cin != Cout:
        xs, s = x, stride
        if stride != 1:
            xs = xs.reshape(N, Cin, H // 2, 2, W // 2, 2).mean(axis=(3, 5))
            s = 1
        sc = bn(conv(xs, params["sc_conv_w"], s=s), "sc_bn")
    else:
        sc = x
    return jnp.maximum(y + sc, 0.0)


# ---------------------------------------------------------------------------
# Demo / self-test
# ---------------------------------------------------------------------------

def _make_params(key, Cin, Cout, dilations, group_width):
    num_splits = len(dilations)
    temp = Cout // num_splits
    w_se = max(1, Cin // 4)
    keys = iter(jax.random.split(key, 40))

    def nrm(shape, s=0.2):
        return s * jax.random.normal(next(keys), shape, jnp.float32)

    def bnp(pfx):
        return {
            pfx + "_gamma": 1.0 + 0.1 * jax.random.normal(next(keys), (Cout,), jnp.float32),
            pfx + "_beta": 0.1 * jax.random.normal(next(keys), (Cout,), jnp.float32),
            pfx + "_mean": 0.1 * jax.random.normal(next(keys), (Cout,), jnp.float32),
            pfx + "_var": jax.random.uniform(next(keys), (Cout,), jnp.float32, 0.5, 1.5),
        }

    params = {
        "conv1_w": nrm((Cout, Cin, 1, 1)),
        "conv2_w": tuple(nrm((temp, group_width, 3, 3)) for _ in dilations),
        "conv3_w": nrm((Cout, Cout, 1, 1)),
        "se_w1": nrm((w_se, Cout, 1, 1)), "se_b1": nrm((w_se,)),
        "se_w2": nrm((Cout, w_se, 1, 1)), "se_b2": nrm((Cout,)),
        "sc_conv_w": nrm((Cout, Cin, 1, 1)),
    }
    for p in ("bn1", "bn2", "bn3", "sc_bn"):
        params.update(bnp(p))
    return params


if __name__ == "__main__":
    key = jax.random.PRNGKey(0)
    N, Cin, Cout, H, W = 2, 4, 8, 16, 16
    kx, kp1, kp2 = jax.random.split(key, 3)
    x = jax.random.normal(kx, (N, Cin, H, W), jnp.float32)

    # Config 1: DilatedConv (two dilations), stride 2, SE, avg-downsample shortcut.
    cfg1 = dict(dilations=(1, 2), group_width=4, stride=2)
    p1 = _make_params(kp1, Cin, Cout, cfg1["dilations"], cfg1["group_width"])
    out1 = jax.block_until_ready(
        jax.jit(functools.partial(dblock_forward, **cfg1))(x, p1))
    ref1 = _reference_dblock(x, p1, **cfg1)
    assert out1.shape == (N, Cout, H // 2, W // 2), out1.shape
    assert jnp.allclose(out1, ref1, atol=5e-4, rtol=5e-4), \
        float(jnp.max(jnp.abs(out1 - ref1)))

    # Config 2: single-dilation grouped conv2, stride 1, 1x1 (no-pool) shortcut.
    cfg2 = dict(dilations=(1,), group_width=4, stride=1)
    p2 = _make_params(kp2, Cin, Cout, cfg2["dilations"], cfg2["group_width"])
    out2 = jax.block_until_ready(
        jax.jit(functools.partial(dblock_forward, **cfg2))(x, p2))
    ref2 = _reference_dblock(x, p2, **cfg2)
    assert out2.shape == (N, Cout, H, W), out2.shape
    assert jnp.allclose(out2, ref2, atol=5e-4, rtol=5e-4), \
        float(jnp.max(jnp.abs(out2 - ref2)))

    print("KERNEL_OK")
</pallas_src>

<mosaic_0001>
module attributes {stable_mosaic.version = 11 : i64} {
  func.func @_tap_conv_kernel(%arg0: i32, %arg1: i32, %arg2: memref<1x1x4x256xf32, #tpu.memory_space<vmem>>, %arg3: memref<1x8x4xf32, #tpu.memory_space<vmem>>, %arg4: memref<8x1xf32, #tpu.memory_space<vmem>>, %arg5: memref<1x8x256xf32, #tpu.memory_space<vmem>>) attributes {dimension_semantics = [#tpu.dimension_semantics<parallel>, #tpu.dimension_semantics<parallel>], iteration_bounds = array<i64: 2, 1>, scalar_prefetch = 0 : i64, scratch_operands = 0 : i64, tpu.core_type = #tpu.core_type<tc>, window_params = [{transform_indices = @transform_0, window_bounds = array<i64: 1, 1, 4, 256>}, {pipeline_mode = #tpu.pipeline_mode<synchronous>, transform_indices = @transform_1, window_bounds = array<i64: 1, 8, 4>}, {pipeline_mode = #tpu.pipeline_mode<synchronous>, transform_indices = @transform_2, window_bounds = array<i64: 8, 1>}, {transform_indices = @transform_3, window_bounds = array<i64: 1, 8, 256>}]} {
    %c0 = arith.constant 0 : index
    %c0_0 = arith.constant 0 : index
    %c0_1 = arith.constant 0 : index
    %c0_2 = arith.constant 0 : index
    %0 = vector.load %arg2[%c0, %c0_0, %c0_1, %c0_2] : memref<1x1x4x256xf32, #tpu.memory_space<vmem>>, vector<1x1x4x256xf32>
    %1 = vector.shape_cast %0 : vector<1x1x4x256xf32> to vector<4x256xf32>
    %c0_3 = arith.constant 0 : index
    %c0_4 = arith.constant 0 : index
    %c0_5 = arith.constant 0 : index
    %2 = vector.load %arg3[%c0_3, %c0_4, %c0_5] : memref<1x8x4xf32, #tpu.memory_space<vmem>>, vector<1x8x4xf32>
    %3 = vector.shape_cast %2 : vector<1x8x4xf32> to vector<8x4xf32>
    %cst = arith.constant dense<0.000000e+00> : vector<8x256xf32>
    %4 = tpu.matmul %3, %1, %cst {dimension_numbers = #tpu.dot_dimension_numbers<[1], [0], [0], [1], [0, 0, 1, 1], [], []>} : vector<8x4xf32>, vector<4x256xf32>, vector<8x256xf32> -> vector<8x256xf32>
    %c0_6 = arith.constant 0 : index
    %c0_7 = arith.constant 0 : index
    %5 = vector.load %arg4[%c0_6, %c0_7] : memref<8x1xf32, #tpu.memory_space<vmem>>, vector<8x1xf32>
    %6 = vector.broadcast %5 : vector<8x1xf32> to vector<8x256xf32>
    %7 = arith.addf %4, %6 : vector<8x256xf32>
    %cst_8 = arith.constant 0.000000e+00 : f32
    %8 = vector.broadcast %cst_8 : f32 to vector<8x256xf32>
    %9 = arith.maximumf %7, %8 : vector<8x256xf32>
    %c0_9 = arith.constant 0 : index
    %c0_10 = arith.constant 0 : index
    %c0_11 = arith.constant 0 : index
    %10 = vector.load %arg5[%c0_9, %c0_10, %c0_11] : memref<1x8x256xf32, #tpu.memory_space<vmem>>, vector<1x8x256xf32>
    %11 = vector.shape_cast %10 : vector<1x8x256xf32> to vector<8x256xf32>
    %12 = vector.shape_cast %9 : vector<8x256xf32> to vector<1x8x256xf32>
    tpu.vector_store %arg5[%c0_9, %c0_10, %c0_11], %12 {strides = array<i32>} : memref<1x8x256xf32, #tpu.memory_space<vmem>>, vector<1x8x256xf32>,
    return
  }
  func.func @transform_0(%arg0: i32, %arg1: i32) -> (i32, i32, i32, i32) {
    %c0_i32 = arith.constant 0 : i32
    %c0_i32_0 = arith.constant 0 : i32
    %c0_i32_1 = arith.constant 0 : i32
    return %c0_i32, %arg0, %c0_i32_0, %arg1 : i32, i32, i32, i32
  }
  func.func @transform_1(%arg0: i32, %arg1: i32) -> (i32, i32, i32) {
    %c0_i32 = arith.constant 0 : i32
    %c0_i32_0 = arith.constant 0 : i32
    %c0_i32_1 = arith.constant 0 : i32
    %c0_i32_2 = arith.constant 0 : i32
    return %c0_i32, %c0_i32_0, %c0_i32_1 : i32, i32, i32
  }
  func.func @transform_2(%arg0: i32, %arg1: i32) -> (i32, i32) {
    %c0_i32 = arith.constant 0 : i32
    %c0_i32_0 = arith.constant 0 : i32
    %c0_i32_1 = arith.constant 0 : i32
    return %c0_i32, %c0_i32_0 : i32, i32
  }
  func.func @transform_3(%arg0: i32, %arg1: i32) -> (i32, i32, i32) {
    %c0_i32 = arith.constant 0 : i32
    %c0_i32_0 = arith.constant 0 : i32
    return %arg0, %c0_i32, %arg1 : i32, i32, i32
  }
}

module attributes {stable_mosaic.version = 11 : i64} {
  func.func @_tap_conv_kernel(%arg0: i32, %arg1: i32, %arg2: memref<4x1x4x64xf32, #tpu.memory_space<vmem>>, %arg3: memref<1x8x4xf32, #tpu.memory_space<vmem>>, %arg4: memref<8x1xf32, #tpu.memory_space<vmem>>, %arg5: memref<1x8x64xf32, #tpu.memory_space<vmem>>) attributes {dimension_semantics = [#tpu.dimension_semantics<parallel>, #tpu.dimension_semantics<parallel>], iteration_bounds = array<i64: 2, 1>, scalar_prefetch = 0 : i64, scratch_operands = 0 : i64, tpu.core_type = #tpu.core_type<tc>, window_params = [{transform_indices = @transform_0, window_bounds = array<i64: 4, 1, 4, 64>}, {pipeline_mode = #tpu.pipeline_mode<synchronous>, transform_indices = @transform_1, window_bounds = array<i64: 1, 8, 4>}, {pipeline_mode = #tpu.pipeline_mode<synchronous>, transform_indices = @transform_2, window_bounds = array<i64: 8, 1>}, {transform_indices = @transform_3, window_bounds = array<i64: 1, 8, 64>}]} {
    %c0 = arith.constant 0 : index
    %c0_0 = arith.constant 0 : index
    %c0_1 = arith.constant 0 : index
    %c0_2 = arith.constant 0 : index
    %0 = vector.load %arg2[%c0, %c0_0, %c0_1, %c0_2] : memref<4x1x4x64xf32, #tpu.memory_space<vmem>>, vector<1x1x4x64xf32>
    %1 = vector.shape_cast %0 : vector<1x1x4x64xf32> to vector<4x64xf32>
    %c1 = arith.constant 1 : index
    %c0_3 = arith.constant 0 : index
    %c0_4 = arith.constant 0 : index
    %c0_5 = arith.constant 0 : index
    %2 = vector.load %arg2[%c1, %c0_3, %c0_4, %c0_5] : memref<4x1x4x64xf32, #tpu.memory_space<vmem>>, vector<1x1x4x64xf32>
    %3 = vector.shape_cast %2 : vector<1x1x4x64xf32> to vector<4x64xf32>
    %4 = arith.addf %1, %3 : vector<4x64xf32>
    %c2 = arith.constant 2 : index
    %c0_6 = arith.constant 0 : index
    %c0_7 = arith.constant 0 : index
    %c0_8 = arith.constant 0 : index
    %5 = vector.load %arg2[%c2, %c0_6, %c0_7, %c0_8] : memref<4x1x4x64xf32, #tpu.memory_space<vmem>>, vector<1x1x4x64xf32>
    %6 = vector.shape_cast %5 : vector<1x1x4x64xf32> to vector<4x64xf32>
    %7 = arith.addf %4, %6 : vector<4x64xf32>
    %c3 = arith.constant 3 : index
    %c0_9 = arith.constant 0 : index
    %c0_10 = arith.constant 0 : index
    %c0_11 = arith.constant 0 : index
    %8 = vector.load %arg2[%c3, %c0_9, %c0_10, %c0_11] : memref<4x1x4x64xf32, #tpu.memory_space<vmem>>, vector<1x1x4x64xf32>
    %9 = vector.shape_cast %8 : vector<1x1x4x64xf32> to vector<4x64xf32>
    %10 = arith.addf %7, %9 : vector<4x64xf32>
    %c0_12 = arith.constant 0 : index
    %c0_13 = arith.constant 0 : index
    %c0_14 = arith.constant 0 : index
    %11 = vector.load %arg3[%c0_12, %c0_13, %c0_14] : memref<1x8x4xf32, #tpu.memory_space<vmem>>, vector<1x8x4xf32>
    %12 = vector.shape_cast %11 : vector<1x8x4xf32> to vector<8x4xf32>
    %cst = arith.constant dense<0.000000e+00> : vector<8x64xf32>
    %13 = tpu.matmul %12, %10, %cst {dimension_numbers = #tpu.dot_dimension_numbers<[1], [0], [0], [1], [0, 0, 1, 1], [], []>} : vector<8x4xf32>, vector<4x64xf32>, vector<8x64xf32> -> vector<8x64xf32>
    %c0_15 = arith.constant 0 : index
    %c0_16 = arith.constant 0 : index
    %14 = vector.load %arg4[%c0_15, %c0_16] : memref<8x1xf32, #tpu.memory_space<vmem>>, vector<8x1xf32>
    %15 = vector.broadcast %14 : vector<8x1xf32> to vector<8x64xf32>
    %16 = arith.addf %13, %15 : vector<8x64xf32>
    %c0_17 = arith.constant 0 : index
    %c0_18 = arith.constant 0 : index
    %c0_19 = arith.constant 0 : index
    %17 = vector.load %arg5[%c0_17, %c0_18, %c0_19] : memref<1x8x64xf32, #tpu.memory_space<vmem>>, vector<1x8x64xf32>
    %18 = vector.shape_cast %17 : vector<1x8x64xf32> to vector<8x64xf32>
    %19 = vector.shape_cast %16 : vector<8x64xf32> to vector<1x8x64xf32>
    tpu.vector_store %arg5[%c0_17, %c0_18, %c0_19], %19 {strides = array<i32>} : memref<1x8x64xf32, #tpu.memory_space<vmem>>, vector<1x8x64xf32>,
    return
  }
  func.func @transform_0(%arg0: i32, %arg1: i32) -> (i32, i32, i32, i32) {
    %c0_i32 = arith.constant 0 : i32
    %c0_i32_0 = arith.constant 0 : i32
    %c0_i32_1 = arith.constant 0 : i32
    return %c0_i32, %arg0, %c0_i32_0, %arg1 : i32, i32, i32, i32
  }
  func.func @transform_1(%arg0: i32, %arg1: i32) -> (i32, i32, i32) {
    %c0_i32 = arith.constant 0 : i32
    %c0_i32_0 = arith.constant 0 : i32
    %c0_i32_1 = arith.constant 0 : i32
    %c0_i32_2 = arith.constant 0 : i32
    return %c0_i32, %c0_i32_0, %c0_i32_1 : i32, i32, i32
  }
  func.func @transform_2(%arg0: i32, %arg1: i32) -> (i32, i32) {
    %c0_i32 = arith.constant 0 : i32
    %c0_i32_0 = arith.constant 0 : i32
    %c0_i32_1 = arith.constant 0 : i32
    return %c0_i32, %c0_i32_0 : i32, i32
  }
  func.func @transform_3(%arg0: i32, %arg1: i32) -> (i32, i32, i32) {
    %c0_i32 = arith.constant 0 : i32
    %c0_i32_0 = arith.constant 0 : i32
    return %arg0, %c0_i32, %arg1 : i32, i32, i32
  }
}

module attributes {stable_mosaic.version = 11 : i64} {
  func.func @_gated_conv_residual_kernel(%arg0: i32, %arg1: i32, %arg2: memref<1x8x64xf32, #tpu.memory_space<vmem>>, %arg3: memref<1x8x1xf32, #tpu.memory_space<vmem>>, %arg4: memref<8x8xf32, #tpu.memory_space<vmem>>, %arg5: memref<8x1xf32, #tpu.memory_space<vmem>>, %arg6: memref<1x8x64xf32, #tpu.memory_space<vmem>>, %arg7: memref<1x8x64xf32, #tpu.memory_space<vmem>>) attributes {dimension_semantics = [#tpu.dimension_semantics<parallel>, #tpu.dimension_semantics<parallel>], iteration_bounds = array<i64: 2, 1>, scalar_prefetch = 0 : i64, scratch_operands = 0 : i64, tpu.core_type = #tpu.core_type<tc>, window_params = [{transform_indices = @transform_0, window_bounds = array<i64: 1, 8, 64>}, {transform_indices = @transform_1, window_bounds = array<i64: 1, 8, 1>}, {pipeline_mode = #tpu.pipeline_mode<synchronous>, transform_indices = @transform_2, window_bounds = array<i64: 8, 8>}, {pipeline_mode = #tpu.pipeline_mode<synchronous>, transform_indices = @transform_3, window_bounds = array<i64: 8, 1>}, {transform_indices = @transform_4, window_bounds = array<i64: 1, 8, 64>}, {transform_indices = @transform_5, window_bounds = array<i64: 1, 8, 64>}]} {
    %c0 = arith.constant 0 : index
    %c0_0 = arith.constant 0 : index
    %c0_1 = arith.constant 0 : index
    %0 = vector.load %arg2[%c0, %c0_0, %c0_1] : memref<1x8x64xf32, #tpu.memory_space<vmem>>, vector<1x8x64xf32>
    %1 = vector.shape_cast %0 : vector<1x8x64xf32> to vector<8x64xf32>
    %c0_2 = arith.constant 0 : index
    %c0_3 = arith.constant 0 : index
    %c0_4 = arith.constant 0 : index
    %2 = vector.load %arg3[%c0_2, %c0_3, %c0_4] : memref<1x8x1xf32, #tpu.memory_space<vmem>>, vector<1x8x1xf32>
    %3 = vector.shape_cast %2 : vector<1x8x1xf32> to vector<8x1xf32>
    %4 = vector.broadcast %3 : vector<8x1xf32> to vector<8x64xf32>
    %5 = arith.mulf %1, %4 : vector<8x64xf32>
    %c0_5 = arith.constant 0 : index
    %c0_6 = arith.constant 0 : index
    %6 = vector.load %arg4[%c0_5, %c0_6] : memref<8x8xf32, #tpu.memory_space<vmem>>, vector<8x8xf32>
    %cst = arith.constant dense<0.000000e+00> : vector<8x64xf32>
    %7 = tpu.matmul %6, %5, %cst {dimension_numbers = #tpu.dot_dimension_numbers<[1], [0], [0], [1], [0, 0, 1, 1], [], []>} : vector<8x8xf32>, vector<8x64xf32>, vector<8x64xf32> -> vector<8x64xf32>
    %c0_7 = arith.constant 0 : index
    %c0_8 = arith.constant 0 : index
    %8 = vector.load %arg5[%c0_7, %c0_8] : memref<8x1xf32, #tpu.memory_space<vmem>>, vector<8x1xf32>
    %9 = vector.broadcast %8 : vector<8x1xf32> to vector<8x64xf32>
    %10 = arith.addf %7, %9 : vector<8x64xf32>
    %c0_9 = arith.constant 0 : index
    %c0_10 = arith.constant 0 : index
    %c0_11 = arith.constant 0 : index
    %11 = vector.load %arg6[%c0_9, %c0_10, %c0_11] : memref<1x8x64xf32, #tpu.memory_space<vmem>>, vector<1x8x64xf32>
    %12 = vector.shape_cast %11 : vector<1x8x64xf32> to vector<8x64xf32>
    %13 = arith.addf %10, %12 : vector<8x64xf32>
    %cst_12 = arith.constant 0.000000e+00 : f32
    %14 = vector.broadcast %cst_12 : f32 to vector<8x64xf32>
    %15 = arith.maximumf %13, %14 : vector<8x64xf32>
    %c0_13 = arith.constant 0 : index
    %c0_14 = arith.constant 0 : index
    %c0_15 = arith.constant 0 : index
    %16 = vector.load %arg7[%c0_13, %c0_14, %c0_15] : memref<1x8x64xf32, #tpu.memory_space<vmem>>, vector<1x8x64xf32>
    %17 = vector.shape_cast %16 : vector<1x8x64xf32> to vector<8x64xf32>
    %18 = vector.shape_cast %15 : vector<8x64xf32> to vector<1x8x64xf32>
    tpu.vector_store %arg7[%c0_13, %c0_14, %c0_15], %18 {strides = array<i32>} : memref<1x8x64xf32, #tpu.memory_space<vmem>>, vector<1x8x64xf32>,
    return
  }
  func.func @transform_0(%arg0: i32, %arg1: i32) -> (i32, i32, i32) {
    %c0_i32 = arith.constant 0 : i32
    %c0_i32_0 = arith.constant 0 : i32
    return %arg0, %c0_i32, %arg1 : i32, i32, i32
  }
  func.func @transform_1(%arg0: i32, %arg1: i32) -> (i32, i32, i32) {
    %c0_i32 = arith.constant 0 : i32
    %c0_i32_0 = arith.constant 0 : i32
    %c0_i32_1 = arith.constant 0 : i32
    return %arg0, %c0_i32, %c0_i32_0 : i32, i32, i32
  }
  func.func @transform_2(%arg0: i32, %arg1: i32) -> (i32, i32) {
    %c0_i32 = arith.constant 0 : i32
    %c0_i32_0 = arith.constant 0 : i32
    %c0_i32_1 = arith.constant 0 : i32
    return %c0_i32, %c0_i32_0 : i32, i32
  }
  func.func @transform_3(%arg0: i32, %arg1: i32) -> (i32, i32) {
    %c0_i32 = arith.constant 0 : i32
    %c0_i32_0 = arith.constant 0 : i32
    %c0_i32_1 = arith.constant 0 : i32
    return %c0_i32, %c0_i32_0 : i32, i32
  }
  func.func @transform_4(%arg0: i32, %arg1: i32) -> (i32, i32, i32) {
    %c0_i32 = arith.constant 0 : i32
    %c0_i32_0 = arith.constant 0 : i32
    return %arg0, %c0_i32, %arg1 : i32, i32, i32
  }
  func.func @transform_5(%arg0: i32, %arg1: i32) -> (i32, i32, i32) {
    %c0_i32 = arith.constant 0 : i32
    %c0_i32_0 = arith.constant 0 : i32
    return %arg0, %c0_i32, %arg1 : i32, i32, i32
  }
}

module attributes {stable_mosaic.version = 11 : i64} {
  func.func @_tap_conv_kernel(%arg0: i32, %arg1: i32, %arg2: memref<9x1x8x64xf32, #tpu.memory_space<vmem>>, %arg3: memref<9x8x8xf32, #tpu.memory_space<vmem>>, %arg4: memref<8x1xf32, #tpu.memory_space<vmem>>, %arg5: memref<1x8x64xf32, #tpu.memory_space<vmem>>, %arg6: memref<1x8x1xf32, #tpu.memory_space<vmem>>) attributes {dimension_semantics = [#tpu.dimension_semantics<parallel>, #tpu.dimension_semantics<arbitrary>], iteration_bounds = array<i64: 2, 1>, scalar_prefetch = 0 : i64, scratch_operands = 0 : i64, tpu.core_type = #tpu.core_type<tc>, window_params = [{transform_indices = @transform_0, window_bounds = array<i64: 9, 1, 8, 64>}, {pipeline_mode = #tpu.pipeline_mode<synchronous>, transform_indices = @transform_1, window_bounds = array<i64: 9, 8, 8>}, {pipeline_mode = #tpu.pipeline_mode<synchronous>, transform_indices = @transform_2, window_bounds = array<i64: 8, 1>}, {transform_indices = @transform_3, window_bounds = array<i64: 1, 8, 64>}, {transform_indices = @transform_4, window_bounds = array<i64: 1, 8, 1>}]} {
    %c0 = arith.constant 0 : index
    %c0_0 = arith.constant 0 : index
    %c0_1 = arith.constant 0 : index
    %0 = vector.load %arg3[%c0, %c0_0, %c0_1] : memref<9x8x8xf32, #tpu.memory_space<vmem>>, vector<1x8x8xf32>
    %1 = vector.shape_cast %0 : vector<1x8x8xf32> to vector<8x8xf32>
    %c0_2 = arith.constant 0 : index
    %c0_3 = arith.constant 0 : index
    %c0_4 = arith.constant 0 : index
    %c0_5 = arith.constant 0 : index
    %2 = vector.load %arg2[%c0_2, %c0_3, %c0_4, %c0_5] : memref<9x1x8x64xf32, #tpu.memory_space<vmem>>, vector<1x1x8x64xf32>
    %3 = vector.shape_cast %2 : vector<1x1x8x64xf32> to vector<8x64xf32>
    %cst = arith.constant dense<0.000000e+00> : vector<8x64xf32>
    %4 = tpu.matmul %1, %3, %cst {dimension_numbers = #tpu.dot_dimension_numbers<[1], [0], [0], [1], [0, 0, 1, 1], [], []>} : vector<8x8xf32>, vector<8x64xf32>, vector<8x64xf32> -> vector<8x64xf32>
    %c1 = arith.constant 1 : index
    %c0_6 = arith.constant 0 : index
    %c0_7 = arith.constant 0 : index
    %5 = vector.load %arg3[%c1, %c0_6, %c0_7] : memref<9x8x8xf32, #tpu.memory_space<vmem>>, vector<1x8x8xf32>
    %6 = vector.shape_cast %5 : vector<1x8x8xf32> to vector<8x8xf32>
    %c1_8 = arith.constant 1 : index
    %c0_9 = arith.constant 0 : index
    %c0_10 = arith.constant 0 : index
    %c0_11 = arith.constant 0 : index
    %7 = vector.load %arg2[%c1_8, %c0_9, %c0_10, %c0_11] : memref<9x1x8x64xf32, #tpu.memory_space<vmem>>, vector<1x1x8x64xf32>
    %8 = vector.shape_cast %7 : vector<1x1x8x64xf32> to vector<8x64xf32>
    %cst_12 = arith.constant dense<0.000000e+00> : vector<8x64xf32>
    %9 = tpu.matmul %6, %8, %cst_12 {dimension_numbers = #tpu.dot_dimension_numbers<[1], [0], [0], [1], [0, 0, 1, 1], [], []>} : vector<8x8xf32>, vector<8x64xf32>, vector<8x64xf32> -> vector<8x64xf32>
    %10 = arith.addf %4, %9 : vector<8x64xf32>
    %c2 = arith.constant 2 : index
    %c0_13 = arith.constant 0 : index
    %c0_14 = arith.constant 0 : index
    %11 = vector.load %arg3[%c2, %c0_13, %c0_14] : memref<9x8x8xf32, #tpu.memory_space<vmem>>, vector<1x8x8xf32>
    %12 = vector.shape_cast %11 : vector<1x8x8xf32> to vector<8x8xf32>
    %c2_15 = arith.constant 2 : index
    %c0_16 = arith.constant 0 : index
    %c0_17 = arith.constant 0 : index
    %c0_18 = arith.constant 0 : index
    %13 = vector.load %arg2[%c2_15, %c0_16, %c0_17, %c0_18] : memref<9x1x8x64xf32, #tpu.memory_space<vmem>>, vector<1x1x8x64xf32>
    %14 = vector.shape_cast %13 : vector<1x1x8x64xf32> to vector<8x64xf32>
    %cst_19 = arith.constant dense<0.000000e+00> : vector<8x64xf32>
    %15 = tpu.matmul %12, %14, %cst_19 {dimension_numbers = #tpu.dot_dimension_numbers<[1], [0], [0], [1], [0, 0, 1, 1], [], []>} : vector<8x8xf32>, vector<8x64xf32>, vector<8x64xf32> -> vector<8x64xf32>
    %16 = arith.addf %10, %15 : vector<8x64xf32>
    %c3 = arith.constant 3 : index
    %c0_20 = arith.constant 0 : index
    %c0_21 = arith.constant 0 : index
    %17 = vector.load %arg3[%c3, %c0_20, %c0_21] : memref<9x8x8xf32, #tpu.memory_space<vmem>>, vector<1x8x8xf32>
    %18 = vector.shape_cast %17 : vector<1x8x8xf32> to vector<8x8xf32>
    %c3_22 = arith.constant 3 : index
    %c0_23 = arith.constant 0 : index
    %c0_24 = arith.constant 0 : index
    %c0_25 = arith.constant 0 : index
    %19 = vector.load %arg2[%c3_22, %c0_23, %c0_24, %c0_25] : memref<9x1x8x64xf32, #tpu.memory_space<vmem>>, vector<1x1x8x64xf32>
    %20 = vector.shape_cast %19 : vector<1x1x8x64xf32> to vector<8x64xf32>
    %cst_26 = arith.constant dense<0.000000e+00> : vector<8x64xf32>
    %21 = tpu.matmul %18, %20, %cst_26 {dimension_numbers = #tpu.dot_dimension_numbers<[1], [0], [0], [1], [0, 0, 1, 1], [], []>} : vector<8x8xf32>, vector<8x64xf32>, vector<8x64xf32> -> vector<8x64xf32>
    %22 = arith.addf %16, %21 : vector<8x64xf32>
    %c4 = arith.constant 4 : index
    %c0_27 = arith.constant 0 : index
    %c0_28 = arith.constant 0 : index
    %23 = vector.load %arg3[%c4, %c0_27, %c0_28] : memref<9x8x8xf32, #tpu.memory_space<vmem>>, vector<1x8x8xf32>
    %24 = vector.shape_cast %23 : vector<1x8x8xf32> to vector<8x8xf32>
    %c4_29 = arith.constant 4 : index
    %c0_30 = arith.constant 0 : index
    %c0_31 = arith.constant 0 : index
    %c0_32 = arith.constant 0 : index
    %25 = vector.load %arg2[%c4_29, %c0_30, %c0_31, %c0_32] : memref<9x1x8x64xf32, #tpu.memory_space<vmem>>, vector<1x1x8x64xf32>
    %26 = vector.shape_cast %25 : vector<1x1x8x64xf32> to vector<8x64xf32>
    %cst_33 = arith.constant dense<0.000000e+00> : vector<8x64xf32>
    %27 = tpu.matmul %24, %26, %cst_33 {dimension_numbers = #tpu.dot_dimension_numbers<[1], [0], [0], [1], [0, 0, 1, 1], [], []>} : vector<8x8xf32>, vector<8x64xf32>, vector<8x64xf32> -> vector<8x64xf32>
    %28 = arith.addf %22, %27 : vector<8x64xf32>
    %c5 = arith.constant 5 : index
    %c0_34 = arith.constant 0 : index
    %c0_35 = arith.constant 0 : index
    %29 = vector.load %arg3[%c5, %c0_34, %c0_35] : memref<9x8x8xf32, #tpu.memory_space<vmem>>, vector<1x8x8xf32>
    %30 = vector.shape_cast %29 : vector<1x8x8xf32> to vector<8x8xf32>
    %c5_36 = arith.constant 5 : index
    %c0_37 = arith.constant 0 : index
    %c0_38 = arith.constant 0 : index
    %c0_39 = arith.constant 0 : index
    %31 = vector.load %arg2[%c5_36, %c0_37, %c0_38, %c0_39] : memref<9x1x8x64xf32, #tpu.memory_space<vmem>>, vector<1x1x8x64xf32>
    %32 = vector.shape_cast %31 : vector<1x1x8x64xf32> to vector<8x64xf32>
    %cst_40 = arith.constant dense<0.000000e+00> : vector<8x64xf32>
    %33 = tpu.matmul %30, %32, %cst_40 {dimension_numbers = #tpu.dot_dimension_numbers<[1], [0], [0], [1], [0, 0, 1, 1], [], []>} : vector<8x8xf32>, vector<8x64xf32>, vector<8x64xf32> -> vector<8x64xf32>
    %34 = arith.addf %28, %33 : vector<8x64xf32>
    %c6 = arith.constant 6 : index
    %c0_41 = arith.constant 0 : index
    %c0_42 = arith.constant 0 : index
    %35 = vector.load %arg3[%c6, %c0_41, %c0_42] : memref<9x8x8xf32, #tpu.memory_space<vmem>>, vector<1x8x8xf32>
    %36 = vector.shape_cast %35 : vector<1x8x8xf32> to vector<8x8xf32>
    %c6_43 = arith.constant 6 : index
    %c0_44 = arith.constant 0 : index
    %c0_45 = arith.constant 0 : index
    %c0_46 = arith.constant 0 : index
    %37 = vector.load %arg2[%c6_43, %c0_44, %c0_45, %c0_46] : memref<9x1x8x64xf32, #tpu.memory_space<vmem>>, vector<1x1x8x64xf32>
    %38 = vector.shape_cast %37 : vector<1x1x8x64xf32> to vector<8x64xf32>
    %cst_47 = arith.constant dense<0.000000e+00> : vector<8x64xf32>
    %39 = tpu.matmul %36, %38, %cst_47 {dimension_numbers = #tpu.dot_dimension_numbers<[1], [0], [0], [1], [0, 0, 1, 1], [], []>} : vector<8x8xf32>, vector<8x64xf32>, vector<8x64xf32> -> vector<8x64xf32>
    %40 = arith.addf %34, %39 : vector<8x64xf32>
    %c7 = arith.constant 7 : index
    %c0_48 = arith.constant 0 : index
    %c0_49 = arith.constant 0 : index
    %41 = vector.load %arg3[%c7, %c0_48, %c0_49] : memref<9x8x8xf32, #tpu.memory_space<vmem>>, vector<1x8x8xf32>
    %42 = vector.shape_cast %41 : vector<1x8x8xf32> to vector<8x8xf32>
    %c7_50 = arith.constant 7 : index
    %c0_51 = arith.constant 0 : index
    %c0_52 = arith.constant 0 : index
    %c0_53 = arith.constant 0 : index
    %43 = vector.load %arg2[%c7_50, %c0_51, %c0_52, %c0_53] : memref<9x1x8x64xf32, #tpu.memory_space<vmem>>, vector<1x1x8x64xf32>
    %44 = vector.shape_cast %43 : vector<1x1x8x64xf32> to vector<8x64xf32>
    %cst_54 = arith.constant dense<0.000000e+00> : vector<8x64xf32>
    %45 = tpu.matmul %42, %44, %cst_54 {dimension_numbers = #tpu.dot_dimension_numbers<[1], [0], [0], [1], [0, 0, 1, 1], [], []>} : vector<8x8xf32>, vector<8x64xf32>, vector<8x64xf32> -> vector<8x64xf32>
    %46 = arith.addf %40, %45 : vector<8x64xf32>
    %c8 = arith.constant 8 : index
    %c0_55 = arith.constant 0 : index
    %c0_56 = arith.constant 0 : index
    %47 = vector.load %arg3[%c8, %c0_55, %c0_56] : memref<9x8x8xf32, #tpu.memory_space<vmem>>, vector<1x8x8xf32>
    %48 = vector.shape_cast %47 : vector<1x8x8xf32> to vector<8x8xf32>
    %c8_57 = arith.constant 8 : index
    %c0_58 = arith.constant 0 : index
    %c0_59 = arith.constant 0 : index
    %c0_60 = arith.constant 0 : index
    %49 = vector.load %arg2[%c8_57, %c0_58, %c0_59, %c0_60] : memref<9x1x8x64xf32, #tpu.memory_space<vmem>>, vector<1x1x8x64xf32>
    %50 = vector.shape_cast %49 : vector<1x1x8x64xf32> to vector<8x64xf32>
    %cst_61 = arith.constant dense<0.000000e+00> : vector<8x64xf32>
    %51 = tpu.matmul %48, %50, %cst_61 {dimension_numbers = #tpu.dot_dimension_numbers<[1], [0], [0], [1], [0, 0, 1, 1], [], []>} : vector<8x8xf32>, vector<8x64xf32>, vector<8x64xf32> -> vector<8x64xf32>
    %52 = arith.addf %46, %51 : vector<8x64xf32>
    %c0_62 = arith.constant 0 : index
    %c0_63 = arith.constant 0 : index
    %53 = vector.load %arg4[%c0_62, %c0_63] : memref<8x1xf32, #tpu.memory_space<vmem>>, vector<8x1xf32>
    %54 = vector.broadcast %53 : vector<8x1xf32> to vector<8x64xf32>
    %55 = arith.addf %52, %54 : vector<8x64xf32>
    %cst_64 = arith.constant 0.000000e+00 : f32
    %56 = vector.broadcast %cst_64 : f32 to vector<8x64xf32>
    %57 = arith.maximumf %55, %56 : vector<8x64xf32>
    %c0_65 = arith.constant 0 : index
    %c0_66 = arith.constant 0 : index
    %c0_67 = arith.constant 0 : index
    %58 = vector.load %arg5[%c0_65, %c0_66, %c0_67] : memref<1x8x64xf32, #tpu.memory_space<vmem>>, vector<1x8x64xf32>
    %59 = vector.shape_cast %58 : vector<1x8x64xf32> to vector<8x64xf32>
    %60 = vector.shape_cast %57 : vector<8x64xf32> to vector<1x8x64xf32>
    tpu.vector_store %arg5[%c0_65, %c0_66, %c0_67], %60 {strides = array<i32>} : memref<1x8x64xf32, #tpu.memory_space<vmem>>, vector<1x8x64xf32>,
    %c0_i32 = arith.constant 0 : i32
    %61 = arith.cmpi eq, %arg1, %c0_i32 : i32
    %62 = arith.extui %61 : i1 to i32
    %c0_i32_68 = arith.constant 0 : i32
    %63 = arith.cmpi ne, %62, %c0_i32_68 : i32
    scf.if %63 {
      %cst_76 = arith.constant 0.000000e+00 : f32
      %72 = vector.broadcast %cst_76 : f32 to vector<1x8x1xf32>
      %c0_77 = arith.constant 0 : index
      %c0_78 = arith.constant 0 : index
      %c0_79 = arith.constant 0 : index
      %73 = vector.load %arg6[%c0_77, %c0_78, %c0_79] : memref<1x8x1xf32, #tpu.memory_space<vmem>>, vector<1x8x1xf32>
      tpu.vector_store %arg6[%c0_77, %c0_78, %c0_79], %72 {strides = array<i32>} : memref<1x8x1xf32, #tpu.memory_space<vmem>>, vector<1x8x1xf32>,
    } else {
    }
    %c0_69 = arith.constant 0 : index
    %c0_70 = arith.constant 0 : index
    %c0_71 = arith.constant 0 : index
    %64 = vector.load %arg6[%c0_69, %c0_70, %c0_71] : memref<1x8x1xf32, #tpu.memory_space<vmem>>, vector<1x8x1xf32>
    %65 = vector.shape_cast %64 : vector<1x8x1xf32> to vector<8x1xf32>
    %cst_72 = arith.constant dense<0.000000e+00> : vector<8xf32>
    %66 = vector.multi_reduction <add>, %57, %cst_72 [1] : vector<8x64xf32> to vector<8xf32>
    %67 = vector.shape_cast %66 : vector<8xf32> to vector<8x1xf32>
    %68 = arith.addf %65, %67 : vector<8x1xf32>
    %c0_73 = arith.constant 0 : index
    %c0_74 = arith.constant 0 : index
    %c0_75 = arith.constant 0 : index
    %69 = vector.load %arg6[%c0_73, %c0_74, %c0_75] : memref<1x8x1xf32, #tpu.memory_space<vmem>>, vector<1x8x1xf32>
    %70 = vector.shape_cast %69 : vector<1x8x1xf32> to vector<8x1xf32>
    %71 = vector.shape_cast %68 : vector<8x1xf32> to vector<1x8x1xf32>
    tpu.vector_store %arg6[%c0_73, %c0_74, %c0_75], %71 {strides = array<i32>} : memref<1x8x1xf32, #tpu.memory_space<vmem>>, vector<1x8x1xf32>,
    return
  }
  func.func @transform_0(%arg0: i32, %arg1: i32) -> (i32, i32, i32, i32) {
    %c0_i32 = arith.constant 0 : i32
    %c0_i32_0 = arith.constant 0 : i32
    %c0_i32_1 = arith.constant 0 : i32
    return %c0_i32, %arg0, %c0_i32_0, %arg1 : i32, i32, i32, i32
  }
  func.func @transform_1(%arg0: i32, %arg1: i32) -> (i32, i32, i32) {
    %c0_i32 = arith.constant 0 : i32
    %c0_i32_0 = arith.constant 0 : i32
    %c0_i32_1 = arith.constant 0 : i32
    %c0_i32_2 = arith.constant 0 : i32
    return %c0_i32, %c0_i32_0, %c0_i32_1 : i32, i32, i32
  }
  func.func @transform_2(%arg0: i32, %arg1: i32) -> (i32, i32) {
    %c0_i32 = arith.constant 0 : i32
    %c0_i32_0 = arith.constant 0 : i32
    %c0_i32_1 = arith.constant 0 : i32
    return %c0_i32, %c0_i32_0 : i32, i32
  }
  func.func @transform_3(%arg0: i32, %arg1: i32) -> (i32, i32, i32) {
    %c0_i32 = arith.constant 0 : i32
    %c0_i32_0 = arith.constant 0 : i32
    return %arg0, %c0_i32, %arg1 : i32, i32, i32
  }
  func.func @transform_4(%arg0: i32, %arg1: i32) -> (i32, i32, i32) {
    %c0_i32 = arith.constant 0 : i32
    %c0_i32_0 = arith.constant 0 : i32
    %c0_i32_1 = arith.constant 0 : i32
    return %arg0, %c0_i32, %c0_i32_0 : i32, i32, i32
  }
}

</mosaic_0001>

<llo_original>
// kernel: dblock_forward.4
$region0: #{dblock_forward.4}
  #allocation0 [shape = 'u32[]', space=smem, size = 0x4, offset = 0x4, fixed_abs, tag = 'smem constant byte address 0x4 - core index']
  #allocation1 [shape = 'u32[144,128]{1,0:T(1,128)}', space=vmem, size = 0x12000, scoped, tag = 'internal scratch']
  %s0 = inlined_call_operand.vmem [shape: f32[1,2,4,256], index: 0, kind: input, shape index: {}]
  %s1 = inlined_call_operand.vmem [shape: f32[1,8,4], index: 1, kind: input, shape index: {}]
  %s2 = inlined_call_operand.vmem [shape: f32[8,1], index: 2, kind: input, shape index: {}]
  %s3 = inlined_call_operand.vmem [shape: f32[2,8,256], index: 3, kind: output, shape index: {}]
  %s4 = sld [smem:[#allocation0]]
  $region45: #{dblock_forward.4} parent=0
    _
  %s6 = ssub.s32 1, %s4
  %s7 = scalar_select 0, %s6, %s4
  loop: start=0, step=1, limit=4
  $region2: #{dblock_forward.4} parent=0 // loop_pre_header
    _
  $region3: #{dblock_forward.4} parent=0 // loop_header
    %s9 = sphi 0, %s13
    %p10 = scmp.ge.s32.totalorder %s9, 4
    %s16 = sphi 0, %s28
    %s17 = sphi 0, %s24
    %s18 = sphi 0, %s16
    %s19 = sphi 0, %s17
    %s20 = sphi 0, %s18
    %s21 = sphi 0, %s19
    %s33 = sphi 0, %s35
    %s36 = sphi 0, %s33
    %s37 = sphi 0, %s36
    %s53 = sphi 0, %s37
    %s57 = sphi 0, %s57
    %s59 = sphi 0, %s57
    %s60 = sphi 0, %s59
    %s74 = sphi 0, %s60
    %s78 = sphi 0, %s78
    %s80 = sphi 0, %s78
    %s81 = sphi 0, %s80
    %s95 = sphi 0, %s81
    %s103 = sphi 0, %s105
    %s106 = sphi 0, %s103
    %s107 = sphi 0, %s106
    %s123 = sphi 0, %s107
  $region4: #{dblock_forward.4} parent=0 // loop_header_branch
    %12 = sbr.rel (%p10) target = $region8
  $region5: #{dblock_forward.4} parent=0 // loop_body
    %s14 = ssub.s32 %s9, 1
    %s15 = ssub.s32 %s9, 2
    %s22 = sadd.s32 1, %s17
    %p23 = scmp.ge.s32.totalorder %s22, 1
    %s24 = scalar_select %p23, 0, %s22
    %s25 = sadd.s32 1, %s16
    %s26 = scalar_select %p23, %s25, %s16
    %p27 = scmp.ge.s32.totalorder %s26, 2
    %s28 = scalar_select %p27, 0, %s26
    %s29 = ssub.s32 %s16, %s28
    %s30 = ssub.s32 %s17, %s24
    %s31 = sor.u32 %s29, %s30
    %p32 = scmp.eq.s32.totalorder %s31, 0
    %s34 = sadd.s32 %s33, 1
    %s35 = scalar_select %p32, %s33, %s34
    %p38 = pneg %p32
    %p39 = scmp.eq.s32.totalorder %s9, 1
    %p40 = por %p38, %p39
    %p41 = scmp.ne.s32.totalorder %s33, %s36
    %p42 = scmp.eq.s32.totalorder %s9, 0
    %p43 = por %p41, %p42
    %p44 = scmp.ne.s32.totalorder %s33, %s36
    %p45 = scmp.eq.s32.totalorder %s14, 1
    %p46 = por %p44, %p45
    %p47 = scmp.ne.s32.totalorder %s36, %s37
    %p48 = scmp.eq.s32.totalorder %s14, 0
    %p49 = por %p47, %p48
    %p50 = scmp.ne.s32.totalorder %s36, %s37
    %p51 = scmp.eq.s32.totalorder %s15, 1
    %p52 = por %p50, %p51
    %p54 = scmp.ne.s32.totalorder %s37, %s53
    %p55 = scmp.eq.s32.totalorder %s15, 0
    %p56 = por %p54, %p55
    %s58 = sadd.s32 %s57, 1
    %p61 = scmp.eq.s32.totalorder %s9, 1
    %p62 = scmp.ne.s32.totalorder %s57, %s59
    %p63 = scmp.eq.s32.totalorder %s9, 0
    %p64 = por %p62, %p63
    %p65 = scmp.ne.s32.totalorder %s57, %s59
    %p66 = scmp.eq.s32.totalorder %s14, 1
    %p67 = por %p65, %p66
    %p68 = scmp.ne.s32.totalorder %s59, %s60
    %p69 = scmp.eq.s32.totalorder %s14, 0
    %p70 = por %p68, %p69
    %p71 = scmp.ne.s32.totalorder %s59, %s60
    %p72 = scmp.eq.s32.totalorder %s15, 1
    %p73 = por %p71, %p72
    %p75 = scmp.ne.s32.totalorder %s60, %s74
    %p76 = scmp.eq.s32.totalorder %s15, 0
    %p77 = por %p75, %p76
    %s79 = sadd.s32 %s78, 1
    %p82 = scmp.eq.s32.totalorder %s9, 1
    %p83 = scmp.ne.s32.totalorder %s78, %s80
    %p84 = scmp.eq.s32.totalorder %s9, 0
    %p85 = por %p83, %p84
    %p86 = scmp.ne.s32.totalorder %s78, %s80
    %p87 = scmp.eq.s32.totalorder %s14, 1
    %p88 = por %p86, %p87
    %p89 = scmp.ne.s32.totalorder %s80, %s81
    %p90 = scmp.eq.s32.totalorder %s14, 0
    %p91 = por %p89, %p90
    %p92 = scmp.ne.s32.totalorder %s80, %s81
    %p93 = scmp.eq.s32.totalorder %s15, 1
    %p94 = por %p92, %p93
    %p96 = scmp.ne.s32.totalorder %s81, %s95
    %p97 = scmp.eq.s32.totalorder %s15, 0
    %p98 = por %p96, %p97
    %s99 = ssub.s32 %s16, %s28
    %s100 = ssub.s32 %s17, %s24
    %s101 = sor.u32 %s99, %s100
    %p102 = scmp.eq.s32.totalorder %s101, 0
    %s104 = sadd.s32 %s103, 1
    %s105 = scalar_select %p102, %s103, %s104
    %p108 = pneg %p102
    %p109 = scmp.eq.s32.totalorder %s9, 1
    %p110 = por %p108, %p109
    %p111 = scmp.ne.s32.totalorder %s103, %s106
    %p112 = scmp.eq.s32.totalorder %s9, 0
    %p113 = por %p111, %p112
    %p114 = scmp.ne.s32.totalorder %s103, %s106
    %p115 = scmp.eq.s32.totalorder %s14, 1
    %p116 = por %p114, %p115
    %p117 = scmp.ne.s32.totalorder %s106, %s107
    %p118 = scmp.eq.s32.totalorder %s14, 0
    %p119 = por %p117, %p118
    %p120 = scmp.ne.s32.totalorder %s106, %s107
    %p121 = scmp.eq.s32.totalorder %s15, 1
    %p122 = por %p120, %p121
    %p124 = scmp.ne.s32.totalorder %s107, %s123
    %p125 = scmp.eq.s32.totalorder %s15, 0
    %p126 = por %p124, %p125
    %p127 = scmp.le.s32.totalorder 1, %s9
    %p128 = scmp.lt.s32.totalorder %s9, 3
    %p129 = pnand %p127, %p128
    %p130 = pneg %p129
    // Predicated region
    $region9: #{dblock_forward.4} parent=5 // pred_check
      _
    $region10: #{dblock_forward.4} parent=5 // pred_check_branch
      %132 = sbr.rel (%p129) target = $region12
    $region11: #{dblock_forward.4} parent=5 // pred_region
      %s133 = ssub.s32 %s9, 1
      // Predicated region
      $region13: #{dblock_forward.4} parent=11 // pred_check
        %p134 = pneg %p70
      $region14: #{dblock_forward.4} parent=11 // pred_check_branch
        %136 = sbr.rel (%p134) target = $region16
      $region15: #{dblock_forward.4} parent=11 // pred_region
        _
      $region16: #{dblock_forward.4} parent=11 // pred_fallthru
        _
      // Predicated region
      $region17: #{dblock_forward.4} parent=11 // pred_check
        %p137 = pneg %p91
      $region18: #{dblock_forward.4} parent=11 // pred_check_branch
        %139 = sbr.rel (%p137) target = $region20
      $region19: #{dblock_forward.4} parent=11 // pred_region
        _
      $region20: #{dblock_forward.4} parent=11 // pred_fallthru
        _
    $region12: #{dblock_forward.4} parent=5 // pred_fallthru
      _
    %p140 = scmp.lt.s32.totalorder %s9, 2
    // Predicated region
    $region21: #{dblock_forward.4} parent=5 // pred_check
      %p141 = pneg %p140
    $region22: #{dblock_forward.4} parent=5 // pred_check_branch
      %143 = sbr.rel (%p141) target = $region24
    $region23: #{dblock_forward.4} parent=5 // pred_region
      // Predicated region
      $region25: #{dblock_forward.4} parent=23 // pred_check
        %p144 = pneg %p43
      $region26: #{dblock_forward.4} parent=23 // pred_check_branch
        %146 = sbr.rel (%p144) target = $region28
      $region27: #{dblock_forward.4} parent=23 // pred_region
        %s147 = smul.u32 2, %s17
        %p148 = scmp.lt.s32.totalorder %s16, 1
        %s149 = scalar_select %p148, %s16, 1
        %p150 = scmp.lt.s32.totalorder %s147, 1
        %s151 = scalar_select %p150, %s147, 1
        %s152 = smul.addr %s149, 2
        %s153 = sadd.s32 %s151, %s152
        %s154 = smul.addr %s153, 4
        %s155 = scalar_lea.vmem %s0, %s154
        %s156 = smul.u32 2, %s17
      $region28: #{dblock_forward.4} parent=23 // pred_fallthru
        _
    $region24: #{dblock_forward.4} parent=5 // pred_fallthru
      _
    %p157 = scmp.le.s32.totalorder 1, %s9
    %p158 = scmp.lt.s32.totalorder %s9, 3
    %p159 = pnand %p157, %p158
    %p160 = pneg %p159
    // Predicated region
    $region29: #{dblock_forward.4} parent=5 // pred_check
      _
    $region30: #{dblock_forward.4} parent=5 // pred_check_branch
      %162 = sbr.rel (%p159) target = $region32
    $region31: #{dblock_forward.4} parent=5 // pred_region
      %s163 = ssub.s32 %s9, 1
      %s164 = smul.u32 2, %s19
      %p165 = scmp.lt.s32.totalorder %s18, 1
      %s166 = scalar_select %p165, %s18, 1
      %p167 = scmp.lt.s32.totalorder %s164, 1
      %s168 = scalar_select %p167, %s164, 1
      %s169 = smul.addr %s166, 2
      %s170 = sadd.s32 %s168, %s169
      %s171 = smul.addr %s170, 4
      %s172 = scalar_lea.vmem %s0, %s171
      %p173 = pneg %p49
      %p174 = pneg %p46
      %p175 = pneg %p70
      %p176 = pneg %p67
      %p177 = pneg %p91
      %p178 = pneg %p88
      %p179 = pneg %p119
      %p180 = pneg %p116
      %s181 = smul.u32 2, %s19
      %p182 = scmp.lt.s32.totalorder %s18, 1
      %s183 = scalar_select %p182, %s18, 1
      %p184 = scmp.lt.s32.totalorder %s181, 1
      %s185 = scalar_select %p184, %s181, 1
      %s186 = smul.addr %s183, 2
      %s187 = sadd.s32 %s185, %s186
      %s188 = smul.addr %s187, 8
      %s189 = scalar_lea.vmem %s3, %s188
      %s190 = smul.u32 2, %s19
      %p191 = scmp.lt.s32.totalorder %s18, 1
      %s192 = scalar_select %p191, %s18, 1
      %p193 = scmp.lt.s32.totalorder %s190, 1
      %s194 = scalar_select %p193, %s190, 1
      %s195 = smul.addr %s192, 2
      %s196 = sadd.s32 %s194, %s195
      %s197 = smul.addr %s196, 4
      %s198 = scalar_lea.vmem %s0, %s197
      %s199 = smul.u32 2, %s19
      %s200 = smul.u32 2, %s19
      %p201 = scmp.lt.s32.totalorder %s18, 1
      %s202 = scalar_select %p201, %s18, 1
      %p203 = scmp.lt.s32.totalorder %s200, 1
      %s204 = scalar_select %p203, %s200, 1
      %s205 = smul.addr %s202, 2
      %s206 = sadd.s32 %s204, %s205
      %s207 = smul.addr %s206, 8
      %s208 = scalar_lea.vmem %s3, %s207
      %s209 = smul.u32 2, %s19
      %v210 = vld [vmem:[%s198] sm:$0xff]
      %v211 = vld [vmem:[%s1] sm:$0xff]
      %v212 = vld [vmem:[%s2] sm:$0xff]
      %214 = vset.pattern.permute.xlu0 0
      %215 = vperm.xlu0 %214, %v212
      %v216 = vpop.permute.xlu0 %215
      %v219 = vcombine.high %v210, %v210
      %vm220 = vcmask 31744
      %v222 = vsel %vm220, %v211, 0
      %vm224 = vcmask 1043456
      %v225 = vsel %vm224, %v210, 0
      %v227 = vsel %vm224, %v219, 0
      %229 = vmatprep.subr.mxu0 %v227
      %230 = vmatpush1.msra.mxu0 %v225
      %231 = vmatprep.subr.mxu0 0.0
      %232 = vmatpush1.msra.mxu0 0.0
      %233 = vmatprep.subr.mxu0 0.0
      %234 = vmatpush1.msra.mxu0 0.0
      %235 = vmatprep.subr.mxu0 0.0
      %236 = vmatpush1.msra.mxu0 0.0
      %237 = vmatprep.subr.mxu0 0.0
      %238 = vmatpush1.msra.mxu0 0.0
      %239 = vmatprep.subr.mxu0 0.0
      %240 = vmatpush1.msra.mxu0 0.0
      %241 = vmatprep.subr.mxu0 0.0
      %242 = vmatpush1.msra.mxu0 0.0
      %243 = vmatprep.subr.mxu0 0.0
      %244 = vmatpush1.msra.mxu0 0.0
      %245 = vmatprep.subr.mxu0 0.0
      %246 = vmatpush1.msra.mxu0 0.0
      %247 = vmatprep.subr.mxu0 0.0
      %248 = vmatpush1.msra.mxu0 0.0
      %249 = vmatprep.subr.mxu0 0.0
      %250 = vmatpush1.msra.mxu0 0.0
      %251 = vmatprep.subr.mxu0 0.0
      %252 = vmatpush1.msra.mxu0 0.0
      %253 = vmatprep.subr.mxu0 0.0
      %254 = vmatpush1.msra.mxu0 0.0
      %255 = vmatprep.subr.mxu0 0.0
      %256 = vmatpush1.msra.mxu0 0.0
      %257 = vmatprep.subr.mxu0 0.0
      %258 = vmatpush1.msra.mxu0 0.0
      %259 = vmatprep.subr.mxu0 0.0
      %260 = vmatpush1.msra.mxu0 0.0
      %261 = vmatprep.subr.mxu0 0.0
      %262 = vmatpush1.msra.mxu0 0.0
      %263 = vmatprep.subr.mxu0 0.0
      %264 = vmatpush1.msra.mxu0 0.0
      %265 = vmatprep.subr.mxu0 0.0
      %266 = vmatpush1.msra.mxu0 0.0
      %267 = vmatprep.subr.mxu0 0.0
      %268 = vmatpush1.msra.mxu0 0.0
      %269 = vmatprep.subr.mxu0 0.0
      %270 = vmatpush1.msra.mxu0 0.0
      %271 = vmatprep.subr.mxu0 0.0
      %272 = vmatpush1.msra.mxu0 0.0
      %273 = vmatprep.subr.mxu0 0.0
      %274 = vmatpush1.msra.mxu0 0.0
      %275 = vmatprep.subr.mxu0 0.0
      %276 = vmatpush1.msra.mxu0 0.0
      %277 = vmatprep.subr.mxu0 0.0
      %278 = vmatpush1.msra.mxu0 0.0
      %279 = vmatprep.subr.mxu0 0.0
      %280 = vmatpush1.msra.mxu0 0.0
      %281 = vmatprep.subr.mxu0 0.0
      %282 = vmatpush1.msra.mxu0 0.0
      %283 = vmatprep.subr.mxu0 0.0
      %284 = vmatpush1.msra.mxu0 0.0
      %285 = vmatprep.subr.mxu0 0.0
      %286 = vmatpush1.msra.mxu0 0.0
      %287 = vmatprep.subr.mxu0 0.0
      %288 = vmatpush1.msra.mxu0 0.0
      %289 = vmatprep.subr.mxu0 0.0
      %290 = vmatpush1.msra.mxu0 0.0
      %291 = vmatprep.subr.mxu0 0.0
      %292 = vmatpush1.msra.mxu0 0.0
      %293 = vmatprep.mubr.f32.mxu0 0.0
      %294 = vmatmul.mubr.f32.gmra.mrb[0].mxu0 %v222
      %v295 = vpop.f32.mrb[0].mxu0
      %v296 = vadd.f32 %v216, %v295
      %v297 = vpop.f32.mrb[0].mxu0
      %v298 = vadd.f32 %v216, %v297
      %299 = vdwg.mxu0
      %v300 = vmax.f32 %v296, 0.0
      %v301 = vmax.f32 %v298, 0.0
      %302 = vst [vmem:[%s208] sm:$0xff] %v300
      %303 = vst [vmem:[%s208 + $0x8] sm:$0xff] %v301
      %s304 = smul.u32 2, %s19
      %p305 = scmp.lt.s32.totalorder %s18, 1
      %s306 = scalar_select %p305, %s18, 1
      %p307 = scmp.lt.s32.totalorder %s304, 1
      %s308 = scalar_select %p307, %s304, 1
      %s309 = smul.addr %s306, 2
      %s310 = sadd.s32 %s308, %s309
      %s311 = smul.addr %s310, 8
      %s312 = scalar_lea.vmem %s3, %s311
      // Predicated region
      $region33: #{dblock_forward.4} parent=31 // pred_check
        %p313 = pneg %p116
      $region34: #{dblock_forward.4} parent=31 // pred_check_branch
        %315 = sbr.rel (%p313) target = $region36
      $region35: #{dblock_forward.4} parent=31 // pred_region
        %s316 = smul.u32 2, %s19
      $region36: #{dblock_forward.4} parent=31 // pred_fallthru
        _
    $region32: #{dblock_forward.4} parent=5 // pred_fallthru
      _
    %p317 = scmp.le.s32.totalorder 2, %s9
    // Predicated region
    $region37: #{dblock_forward.4} parent=5 // pred_check
      %p318 = pneg %p317
    $region38: #{dblock_forward.4} parent=5 // pred_check_branch
      %320 = sbr.rel (%p318) target = $region40
    $region39: #{dblock_forward.4} parent=5 // pred_region
      %s321 = ssub.s32 %s9, 2
      // Predicated region
      $region41: #{dblock_forward.4} parent=39 // pred_check
        %p322 = pneg %p122
      $region42: #{dblock_forward.4} parent=39 // pred_check_branch
        %324 = sbr.rel (%p322) target = $region44
      $region43: #{dblock_forward.4} parent=39 // pred_region
        %s325 = smul.u32 2, %s21
        %p326 = scmp.lt.s32.totalorder %s20, 1
        %s327 = scalar_select %p326, %s20, 1
        %p328 = scmp.lt.s32.totalorder %s325, 1
        %s329 = scalar_select %p328, %s325, 1
        %s330 = smul.addr %s327, 2
        %s331 = sadd.s32 %s329, %s330
        %s332 = smul.addr %s331, 8
        %s333 = scalar_lea.vmem %s3, %s332
      $region44: #{dblock_forward.4} parent=39 // pred_fallthru
        _
    $region40: #{dblock_forward.4} parent=5 // pred_fallthru
      _
  $region6: #{dblock_forward.4} parent=0 // loop_footer
    %s13 = sadd.s32 1, %s9
  $region7: #{dblock_forward.4} parent=0 // loop_footer_branch
    %8 = sbr.rel target = $region3
  $region8: #{dblock_forward.4} parent=0 // loop_exit
    _

// kernel: dblock_forward.6
$region0: #{dblock_forward.6}
  #allocation0 [shape = 'u32[]', space=smem, size = 0x4, offset = 0x4, fixed_abs, tag = 'smem constant byte address 0x4 - core index']
  #allocation1 [shape = 'u32[144,128]{1,0:T(1,128)}', space=vmem, size = 0x12000, scoped, tag = 'internal scratch']
  %s0 = inlined_call_operand.vmem [shape: f32[4,2,4,64], index: 0, kind: input, shape index: {}]
  %s1 = inlined_call_operand.vmem [shape: f32[1,8,4], index: 1, kind: input, shape index: {}]
  %s2 = inlined_call_operand.vmem [shape: f32[8,1], index: 2, kind: input, shape index: {}]
  %s3 = inlined_call_operand.vmem [shape: f32[2,8,64], index: 3, kind: output, shape index: {}]
  %s4 = sld [smem:[#allocation0]]
  $region86: #{dblock_forward.6} parent=0
    _
  %s6 = ssub.s32 1, %s4
  %s7 = scalar_select 0, %s6, %s4
  $region1: #{dblock_forward.6} parent=0
    #allocation2 [shape = 'u8[16384]{0}', space=vmem, size = 0x4000, scoped, tag = 'input window, operand 0']
    loop: start=0, step=1, limit=4
    $region2: #{dblock_forward.6} parent=1 // loop_pre_header
      _
    $region3: #{dblock_forward.6} parent=1 // loop_header
      %s9 = sphi 0, %s13
      %p10 = scmp.ge.s32.totalorder %s9, 4
      %s16 = sphi 0, %s28
      %s17 = sphi 0, %s24
      %s18 = sphi 0, %s16
      %s19 = sphi 0, %s17
      %s20 = sphi 0, %s18
      %s21 = sphi 0, %s19
      %s33 = sphi 0, %s35
      %s36 = sphi 0, %s33
      %s37 = sphi 0, %s36
      %s53 = sphi 0, %s37
      %s57 = sphi 0, %s57
      %s59 = sphi 0, %s57
      %s60 = sphi 0, %s59
      %s74 = sphi 0, %s60
      %s78 = sphi 0, %s78
      %s80 = sphi 0, %s78
      %s81 = sphi 0, %s80
      %s95 = sphi 0, %s81
      %s103 = sphi 0, %s105
      %s106 = sphi 0, %s103
      %s107 = sphi 0, %s106
      %s123 = sphi 0, %s107
    $region4: #{dblock_forward.6} parent=1 // loop_header_branch
      %12 = sbr.rel (%p10) target = $region8
    $region5: #{dblock_forward.6} parent=1 // loop_body
      %s14 = ssub.s32 %s9, 1
      %s15 = ssub.s32 %s9, 2
      %s22 = sadd.s32 1, %s17
      %p23 = scmp.ge.s32.totalorder %s22, 1
      %s24 = scalar_select %p23, 0, %s22
      %s25 = sadd.s32 1, %s16
      %s26 = scalar_select %p23, %s25, %s16
      %p27 = scmp.ge.s32.totalorder %s26, 2
      %s28 = scalar_select %p27, 0, %s26
      %s29 = ssub.s32 %s16, %s28
      %s30 = ssub.s32 %s17, %s24
      %s31 = sor.u32 %s29, %s30
      %p32 = scmp.eq.s32.totalorder %s31, 0
      %s34 = sadd.s32 %s33, 1
      %s35 = scalar_select %p32, %s33, %s34
      %p38 = pneg %p32
      %p39 = scmp.eq.s32.totalorder %s9, 1
      %p40 = por %p38, %p39
      %p41 = scmp.ne.s32.totalorder %s33, %s36
      %p42 = scmp.eq.s32.totalorder %s9, 0
      %p43 = por %p41, %p42
      %p44 = scmp.ne.s32.totalorder %s33, %s36
      %p45 = scmp.eq.s32.totalorder %s14, 1
      %p46 = por %p44, %p45
      %p47 = scmp.ne.s32.totalorder %s36, %s37
      %p48 = scmp.eq.s32.totalorder %s14, 0
      %p49 = por %p47, %p48
      %p50 = scmp.ne.s32.totalorder %s36, %s37
      %p51 = scmp.eq.s32.totalorder %s15, 1
      %p52 = por %p50, %p51
      %p54 = scmp.ne.s32.totalorder %s37, %s53
      %p55 = scmp.eq.s32.totalorder %s15, 0
      %p56 = por %p54, %p55
      %s58 = sadd.s32 %s57, 1
      %p61 = scmp.eq.s32.totalorder %s9, 1
      %p62 = scmp.ne.s32.totalorder %s57, %s59
      %p63 = scmp.eq.s32.totalorder %s9, 0
      %p64 = por %p62, %p63
      %p65 = scmp.ne.s32.totalorder %s57, %s59
      %p66 = scmp.eq.s32.totalorder %s14, 1
      %p67 = por %p65, %p66
      %p68 = scmp.ne.s32.totalorder %s59, %s60
      %p69 = scmp.eq.s32.totalorder %s14, 0
      %p70 = por %p68, %p69
      %p71 = scmp.ne.s32.totalorder %s59, %s60
      %p72 = scmp.eq.s32.totalorder %s15, 1
      %p73 = por %p71, %p72
      %p75 = scmp.ne.s32.totalorder %s60, %s74
      %p76 = scmp.eq.s32.totalorder %s15, 0
      %p77 = por %p75, %p76
      %s79 = sadd.s32 %s78, 1
      %p82 = scmp.eq.s32.totalorder %s9, 1
      %p83 = scmp.ne.s32.totalorder %s78, %s80
      %p84 = scmp.eq.s32.totalorder %s9, 0
      %p85 = por %p83, %p84
      %p86 = scmp.ne.s32.totalorder %s78, %s80
      %p87 = scmp.eq.s32.totalorder %s14, 1
      %p88 = por %p86, %p87
      %p89 = scmp.ne.s32.totalorder %s80, %s81
      %p90 = scmp.eq.s32.totalorder %s14, 0
      %p91 = por %p89, %p90
      %p92 = scmp.ne.s32.totalorder %s80, %s81
      %p93 = scmp.eq.s32.totalorder %s15, 1
      %p94 = por %p92, %p93
      %p96 = scmp.ne.s32.totalorder %s81, %s95
      %p97 = scmp.eq.s32.totalorder %s15, 0
      %p98 = por %p96, %p97
      %s99 = ssub.s32 %s16, %s28
      %s100 = ssub.s32 %s17, %s24
      %s101 = sor.u32 %s99, %s100
      %p102 = scmp.eq.s32.totalorder %s101, 0
      %s104 = sadd.s32 %s103, 1
      %s105 = scalar_select %p102, %s103, %s104
      %p108 = pneg %p102
      %p109 = scmp.eq.s32.totalorder %s9, 1
      %p110 = por %p108, %p109
      %p111 = scmp.ne.s32.totalorder %s103, %s106
      %p112 = scmp.eq.s32.totalorder %s9, 0
      %p113 = por %p111, %p112
      %p114 = scmp.ne.s32.totalorder %s103, %s106
      %p115 = scmp.eq.s32.totalorder %s14, 1
      %p116 = por %p114, %p115
      %p117 = scmp.ne.s32.totalorder %s106, %s107
      %p118 = scmp.eq.s32.totalorder %s14, 0
      %p119 = por %p117, %p118
      %p120 = scmp.ne.s32.totalorder %s106, %s107
      %p121 = scmp.eq.s32.totalorder %s15, 1
      %p122 = por %p120, %p121
      %p124 = scmp.ne.s32.totalorder %s107, %s123
      %p125 = scmp.eq.s32.totalorder %s15, 0
      %p126 = por %p124, %p125
      %p127 = scmp.le.s32.totalorder 1, %s9
      %p128 = scmp.lt.s32.totalorder %s9, 3
      %p129 = pnand %p127, %p128
      %p130 = pneg %p129
      // Predicated region
      $region9: #{dblock_forward.6} parent=5 // pred_check
        _
      $region10: #{dblock_forward.6} parent=5 // pred_check_branch
        %132 = sbr.rel (%p129) target = $region12
      $region11: #{dblock_forward.6} parent=5 // pred_region
        %s133 = ssub.s32 %s9, 1
        // Predicated region
        $region13: #{dblock_forward.6} parent=11 // pred_check
          %p134 = pneg %p70
        $region14: #{dblock_forward.6} parent=11 // pred_check_branch
          %136 = sbr.rel (%p134) target = $region16
        $region15: #{dblock_forward.6} parent=11 // pred_region
          _
        $region16: #{dblock_forward.6} parent=11 // pred_fallthru
          _
        // Predicated region
        $region17: #{dblock_forward.6} parent=11 // pred_check
          %p137 = pneg %p91
        $region18: #{dblock_forward.6} parent=11 // pred_check_branch
          %139 = sbr.rel (%p137) target = $region20
        $region19: #{dblock_forward.6} parent=11 // pred_region
          _
        $region20: #{dblock_forward.6} parent=11 // pred_fallthru
          _
      $region12: #{dblock_forward.6} parent=5 // pred_fallthru
        _
      %p140 = scmp.lt.s32.totalorder %s9, 2
      // Predicated region
      $region21: #{dblock_forward.6} parent=5 // pred_check
        %p141 = pneg %p140
      $region22: #{dblock_forward.6} parent=5 // pred_check_branch
        %143 = sbr.rel (%p141) target = $region24
      $region23: #{dblock_forward.6} parent=5 // pred_region
        // Predicated region
        $region25: #{dblock_forward.6} parent=23 // pred_check
          %p144 = pneg %p43
        $region26: #{dblock_forward.6} parent=23 // pred_check_branch
          %146 = sbr.rel (%p144) target = $region28
        $region27: #{dblock_forward.6} parent=23 // pred_region
          %s147 = sand.u32 %s33, 1
          %s148 = sand.u32 %s33, 1
          %s149 = smul.addr %s148, 16
          %s150 = scalar_lea.vmem [#allocation2], %s149
          %s151 = sadd.s32 %s17, %s16
          %s152 = smul.addr %s151, 4
          %s153 = scalar_lea.vmem %s0, %s152
          // Predicated region
          $region29: #{dblock_forward.6} parent=27 // pred_check
            _
          $region30: #{dblock_forward.6} parent=27 // pred_check_branch
            %155 = sbr.rel (0) target = $region32
          $region31: #{dblock_forward.6} parent=27 // pred_region
            // Predicated region
            $region33: #{dblock_forward.6} parent=31 // pred_check
              _
            $region34: #{dblock_forward.6} parent=31 // pred_check_branch
              %157 = sbr.rel target = $region36
            $region35: #{dblock_forward.6} parent=31 // pred_region
              // Predicated region
              $region48: #{dblock_forward.6} parent=35 // pred_check
                _
              $region49: #{dblock_forward.6} parent=35 // pred_check_branch
                %178 = sbr.rel (0) target = $region51
              $region50: #{dblock_forward.6} parent=35 // pred_region
                loop: start=0, step=1, limit=1
                $region52: #{dblock_forward.6} parent=50 // loop_pre_header
                  _
                $region53: #{dblock_forward.6} parent=50 // loop_header
                  %s180 = sphi 0, %s184
                  %p181 = scmp.ge.s32.totalorder %s180, 1
                  %s185 = sphi %s153, %s153
                  %s186 = sphi %s150, %s150
                $region54: #{dblock_forward.6} parent=50 // loop_header_branch
                  %183 = sbr.rel (%p181) target = $region58
                $region55: #{dblock_forward.6} parent=50 // loop_body
                  _
                $region56: #{dblock_forward.6} parent=50 // loop_footer
                  %s184 = sadd.s32 1, %s180
                $region57: #{dblock_forward.6} parent=50 // loop_footer_branch
                  %179 = sbr.rel target = $region53
                $region58: #{dblock_forward.6} parent=50 // loop_exit
                  _
                loop: start=0, step=1, limit=1
                $region59: #{dblock_forward.6} parent=50 // loop_pre_header
                  _
                $region60: #{dblock_forward.6} parent=50 // loop_header
                  %s189 = sphi 0, %s193
                  %p190 = scmp.ge.s32.totalorder %s189, 1
                  %s194 = sphi %s153, %s153
                  %s195 = sphi %s150, %s150
                $region61: #{dblock_forward.6} parent=50 // loop_header_branch
                  %192 = sbr.rel (%p190) target = $region65
                $region62: #{dblock_forward.6} parent=50 // loop_body
                  %v196 = vld [vmem:[%s194] sm:$0xf]
                  %197 = vst [vmem:[%s195] sm:$0xf] %v196
                  %v198 = vld [vmem:[%s194 + $0x8] sm:$0xf]
                  %199 = vst [vmem:[%s195 + $0x4] sm:$0xf] %v198
                  %v200 = vld [vmem:[%s194 + $0x10] sm:$0xf]
                  %201 = vst [vmem:[%s195 + $0x8] sm:$0xf] %v200
                  %v202 = vld [vmem:[%s194 + $0x18] sm:$0xf]
                  %203 = vst [vmem:[%s195 + $0xc] sm:$0xf] %v202
                $region63: #{dblock_forward.6} parent=50 // loop_footer
                  %s193 = sadd.s32 1, %s189
                $region64: #{dblock_forward.6} parent=50 // loop_footer_branch
                  %188 = sbr.rel target = $region60
                $region65: #{dblock_forward.6} parent=50 // loop_exit
                  _
              $region51: #{dblock_forward.6} parent=35 // pred_fallthru
                _
            $region36: #{dblock_forward.6} parent=31 // pred_fallthru
              _
            // Predicated region
            $region37: #{dblock_forward.6} parent=31 // pred_check
              _
            $region38: #{dblock_forward.6} parent=31 // pred_check_branch
              %159 = sbr.rel (0) target = $region40
            $region39: #{dblock_forward.6} parent=31 // pred_region
              loop: start=0, step=1, limit=1
              $region41: #{dblock_forward.6} parent=39 // loop_pre_header
                _
              $region42: #{dblock_forward.6} parent=39 // loop_header
                %s162 = sphi 0, %s166
                %p163 = scmp.ge.s32.totalorder %s162, 1
                %s167 = sphi %s153, %s153
                %s168 = sphi %s150, %s150
              $region43: #{dblock_forward.6} parent=39 // loop_header_branch
                %165 = sbr.rel (%p163) target = $region47
              $region44: #{dblock_forward.6} parent=39 // loop_body
                %v169 = vld [vmem:[%s167] sm:$0xf]
                %170 = vst [vmem:[%s168] sm:$0xf] %v169
                %v171 = vld [vmem:[%s167 + $0x8] sm:$0xf]
                %172 = vst [vmem:[%s168 + $0x4] sm:$0xf] %v171
                %v173 = vld [vmem:[%s167 + $0x10] sm:$0xf]
                %174 = vst [vmem:[%s168 + $0x8] sm:$0xf] %v173
                %v175 = vld [vmem:[%s167 + $0x18] sm:$0xf]
                %176 = vst [vmem:[%s168 + $0xc] sm:$0xf] %v175
              $region45: #{dblock_forward.6} parent=39 // loop_footer
                %s166 = sadd.s32 1, %s162
              $region46: #{dblock_forward.6} parent=39 // loop_footer_branch
                %161 = sbr.rel target = $region42
              $region47: #{dblock_forward.6} parent=39 // loop_exit
                _
            $region40: #{dblock_forward.6} parent=31 // pred_fallthru
              _
          $region32: #{dblock_forward.6} parent=27 // pred_fallthru
            _
          %204 = vnop
        $region28: #{dblock_forward.6} parent=23 // pred_fallthru
          _
      $region24: #{dblock_forward.6} parent=5 // pred_fallthru
        _
      %p205 = scmp.le.s32.totalorder 1, %s9
      %p206 = scmp.lt.s32.totalorder %s9, 3
      %p207 = pnand %p205, %p206
      %p208 = pneg %p207
      // Predicated region
      $region66: #{dblock_forward.6} parent=5 // pred_check
        _
      $region67: #{dblock_forward.6} parent=5 // pred_check_branch
        %210 = sbr.rel (%p207) target = $region69
      $region68: #{dblock_forward.6} parent=5 // pred_region
        %s211 = ssub.s32 %s9, 1
        %s212 = sand.u32 %s36, 1
        %s213 = sand.u32 %s36, 1
        %s214 = smul.addr %s213, 16
        %s215 = scalar_lea.vmem [#allocation2], %s214
        // Predicated region
        $region70: #{dblock_forward.6} parent=68 // pred_check
          %p216 = pneg %p49
        $region71: #{dblock_forward.6} parent=68 // pred_check_branch
          %218 = sbr.rel (%p216) target = $region73
        $region72: #{dblock_forward.6} parent=68 // pred_region
          _
        $region73: #{dblock_forward.6} parent=68 // pred_fallthru
          _
        %s219 = sand.u32 %s36, 1
        %s220 = sand.u32 %s36, 1
        %s221 = smul.addr %s220, 16
        %s222 = scalar_lea.vmem [#allocation2], %s221
        %p223 = pneg %p49
        %p224 = pneg %p46
        %p225 = pneg %p70
        %p226 = pneg %p67
        %p227 = pneg %p91
        %p228 = pneg %p88
        %p229 = pneg %p119
        %p230 = pneg %p116
        %p231 = scmp.lt.s32.totalorder %s18, 1
        %s232 = scalar_select %p231, %s18, 1
        %p233 = scmp.lt.s32.totalorder %s19, 0
        %s234 = scalar_select %p233, %s19, 0
        %s235 = sadd.s32 %s234, %s232
        %s236 = smul.addr %s235, 8
        %s237 = scalar_lea.vmem %s3, %s236
        %p238 = scmp.lt.s32.totalorder %s18, 1
        %s239 = scalar_select %p238, %s18, 1
        %p240 = scmp.lt.s32.totalorder %s19, 0
        %s241 = scalar_select %p240, %s19, 0
        %s242 = sadd.s32 %s241, %s239
        %s243 = smul.addr %s242, 8
        %s244 = scalar_lea.vmem %s3, %s243
        %v245 = vld [vmem:[%s215] sm:$0xf]
        %s246 = scalar_lea.vmem %s215, 4 [#allocation2]
        %v247 = vld [vmem:[%s246] sm:$0xf]
        %v248 = vadd.f32 %v245, %v247
        %s249 = scalar_lea.vmem %s215, 8 [#allocation2]
        %v250 = vld [vmem:[%s249] sm:$0xf]
        %v251 = vadd.f32 %v248, %v250
        %s252 = scalar_lea.vmem %s215, 12 [#allocation2]
        %v253 = vld [vmem:[%s252] sm:$0xf]
        %v254 = vadd.f32 %v251, %v253
        %v255 = vld [vmem:[%s1] sm:$0xff]
        %v256 = vld [vmem:[%s2] sm:$0xff]
        %258 = vset.pattern.permute.xlu0 0
        %259 = vperm.xlu0 %258, %v256
        %v260 = vpop.permute.xlu0 %259
        %vm262 = vcmask 31744
        %v264 = vsel %vm262, %v255, 0
        %vm266 = vcmask 1043456
        %v268 = vsel %vm266, %v254, 0
        %270 = vmatprep.subr.mxu0 0.0
        %271 = vmatpush1.msra.mxu0 %v268
        %272 = vmatprep.subr.mxu0 0.0
        %273 = vmatpush1.msra.mxu0 0.0
        %274 = vmatprep.subr.mxu0 0.0
        %275 = vmatpush1.msra.mxu0 0.0
        %276 = vmatprep.subr.mxu0 0.0
        %277 = vmatpush1.msra.mxu0 0.0
        %278 = vmatprep.subr.mxu0 0.0
        %279 = vmatpush1.msra.mxu0 0.0
        %280 = vmatprep.subr.mxu0 0.0
        %281 = vmatpush1.msra.mxu0 0.0
        %282 = vmatprep.subr.mxu0 0.0
        %283 = vmatpush1.msra.mxu0 0.0
        %284 = vmatprep.subr.mxu0 0.0
        %285 = vmatpush1.msra.mxu0 0.0
        %286 = vmatprep.subr.mxu0 0.0
        %287 = vmatpush1.msra.mxu0 0.0
        %288 = vmatprep.subr.mxu0 0.0
        %289 = vmatpush1.msra.mxu0 0.0
        %290 = vmatprep.subr.mxu0 0.0
        %291 = vmatpush1.msra.mxu0 0.0
        %292 = vmatprep.subr.mxu0 0.0
        %293 = vmatpush1.msra.mxu0 0.0
        %294 = vmatprep.subr.mxu0 0.0
        %295 = vmatpush1.msra.mxu0 0.0
        %296 = vmatprep.subr.mxu0 0.0
        %297 = vmatpush1.msra.mxu0 0.0
        %298 = vmatprep.subr.mxu0 0.0
        %299 = vmatpush1.msra.mxu0 0.0
        %300 = vmatprep.subr.mxu0 0.0
        %301 = vmatpush1.msra.mxu0 0.0
        %302 = vmatprep.subr.mxu0 0.0
        %303 = vmatpush1.msra.mxu0 0.0
        %304 = vmatprep.subr.mxu0 0.0
        %305 = vmatpush1.msra.mxu0 0.0
        %306 = vmatprep.subr.mxu0 0.0
        %307 = vmatpush1.msra.mxu0 0.0
        %308 = vmatprep.subr.mxu0 0.0
        %309 = vmatpush1.msra.mxu0 0.0
        %310 = vmatprep.subr.mxu0 0.0
        %311 = vmatpush1.msra.mxu0 0.0
        %312 = vmatprep.subr.mxu0 0.0
        %313 = vmatpush1.msra.mxu0 0.0
        %314 = vmatprep.subr.mxu0 0.0
        %315 = vmatpush1.msra.mxu0 0.0
        %316 = vmatprep.subr.mxu0 0.0
        %317 = vmatpush1.msra.mxu0 0.0
        %318 = vmatprep.subr.mxu0 0.0
        %319 = vmatpush1.msra.mxu0 0.0
        %320 = vmatprep.subr.mxu0 0.0
        %321 = vmatpush1.msra.mxu0 0.0
        %322 = vmatprep.subr.mxu0 0.0
        %323 = vmatpush1.msra.mxu0 0.0
        %324 = vmatprep.subr.mxu0 0.0
        %325 = vmatpush1.msra.mxu0 0.0
        %326 = vmatprep.subr.mxu0 0.0
        %327 = vmatpush1.msra.mxu0 0.0
        %328 = vmatprep.subr.mxu0 0.0
        %329 = vmatpush1.msra.mxu0 0.0
        %330 = vmatprep.subr.mxu0 0.0
        %331 = vmatpush1.msra.mxu0 0.0
        %332 = vmatprep.subr.mxu0 0.0
        %333 = vmatpush1.msra.mxu0 0.0
        %334 = vmatprep.mubr.f32.mxu0 0.0
        %335 = vmatmul.mubr.f32.gmra.mrb[0].mxu0 %v264
        %v336 = vpop.f32.mrb[0].mxu0
        %v337 = vadd.f32 %v260, %v336
        %v338 = vpop.f32.mrb[0].mxu0
        %339 = vdwg.mxu0
        %vm340 = vcmask 523264
        %341 = vst.msk [vmem:[%s244] sm:$0xff] %vm340, %v337
        %p342 = scmp.lt.s32.totalorder %s18, 1
        %s343 = scalar_select %p342, %s18, 1
        %p344 = scmp.lt.s32.totalorder %s19, 0
        %s345 = scalar_select %p344, %s19, 0
        %s346 = sadd.s32 %s345, %s343
        %s347 = smul.addr %s346, 8
        %s348 = scalar_lea.vmem %s3, %s347
        // Predicated region
        $region74: #{dblock_forward.6} parent=68 // pred_check
          %p349 = pneg %p116
        $region75: #{dblock_forward.6} parent=68 // pred_check_branch
          %351 = sbr.rel (%p349) target = $region77
        $region76: #{dblock_forward.6} parent=68 // pred_region
          _
        $region77: #{dblock_forward.6} parent=68 // pred_fallthru
          _
      $region69: #{dblock_forward.6} parent=5 // pred_fallthru
        _
      %p352 = scmp.le.s32.totalorder 2, %s9
      // Predicated region
      $region78: #{dblock_forward.6} parent=5 // pred_check
        %p353 = pneg %p352
      $region79: #{dblock_forward.6} parent=5 // pred_check_branch
        %355 = sbr.rel (%p353) target = $region81
      $region80: #{dblock_forward.6} parent=5 // pred_region
        %s356 = ssub.s32 %s9, 2
        // Predicated region
        $region82: #{dblock_forward.6} parent=80 // pred_check
          %p357 = pneg %p122
        $region83: #{dblock_forward.6} parent=80 // pred_check_branch
          %359 = sbr.rel (%p357) target = $region85
        $region84: #{dblock_forward.6} parent=80 // pred_region
          %p360 = scmp.lt.s32.totalorder %s20, 1
          %s361 = scalar_select %p360, %s20, 1
          %p362 = scmp.lt.s32.totalorder %s21, 0
          %s363 = scalar_select %p362, %s21, 0
          %s364 = sadd.s32 %s363, %s361
          %s365 = smul.addr %s364, 8
          %s366 = scalar_lea.vmem %s3, %s365
        $region85: #{dblock_forward.6} parent=80 // pred_fallthru
          _
      $region81: #{dblock_forward.6} parent=5 // pred_fallthru
        _
    $region6: #{dblock_forward.6} parent=1 // loop_footer
      %s13 = sadd.s32 1, %s9
    $region7: #{dblock_forward.6} parent=1 // loop_footer_branch
      %8 = sbr.rel target = $region3
    $region8: #{dblock_forward.6} parent=1 // loop_exit
      _

// kernel: dblock_forward.7
$region0: #{dblock_forward.7}
  #allocation0 [shape = 'u32[]', space=smem, size = 0x4, offset = 0x4, fixed_abs, tag = 'smem constant byte address 0x4 - core index']
  #allocation1 [shape = 'u32[144,128]{1,0:T(1,128)}', space=vmem, size = 0x12000, scoped, tag = 'internal scratch']
  %s0 = inlined_call_operand.vmem [shape: f32[2,8,64], index: 0, kind: input, shape index: {}]
  %s1 = inlined_call_operand.vmem [shape: f32[2,8,1], index: 1, kind: input, shape index: {}]
  %s2 = inlined_call_operand.vmem [shape: f32[8,8], index: 2, kind: input, shape index: {}]
  %s3 = inlined_call_operand.vmem [shape: f32[8,1], index: 3, kind: input, shape index: {}]
  %s4 = inlined_call_operand.vmem [shape: f32[2,8,64], index: 4, kind: input, shape index: {}]
  %s5 = inlined_call_operand.vmem [shape: f32[2,8,64], index: 5, kind: output, shape index: {}]
  %s6 = sld [smem:[#allocation0]]
  $region53: #{dblock_forward.7} parent=0
    _
  %s8 = ssub.s32 1, %s6
  %s9 = scalar_select 0, %s8, %s6
  loop: start=0, step=1, limit=4
  $region2: #{dblock_forward.7} parent=0 // loop_pre_header
    _
  $region3: #{dblock_forward.7} parent=0 // loop_header
    %s11 = sphi 0, %s15
    %p12 = scmp.ge.s32.totalorder %s11, 4
    %s18 = sphi 0, %s30
    %s19 = sphi 0, %s26
    %s20 = sphi 0, %s18
    %s21 = sphi 0, %s19
    %s22 = sphi 0, %s20
    %s23 = sphi 0, %s21
    %s35 = sphi 0, %s37
    %s38 = sphi 0, %s35
    %s39 = sphi 0, %s38
    %s55 = sphi 0, %s39
    %s61 = sphi 0, %s63
    %s64 = sphi 0, %s61
    %s65 = sphi 0, %s64
    %s81 = sphi 0, %s65
    %s85 = sphi 0, %s85
    %s87 = sphi 0, %s85
    %s88 = sphi 0, %s87
    %s102 = sphi 0, %s88
    %s106 = sphi 0, %s106
    %s108 = sphi 0, %s106
    %s109 = sphi 0, %s108
    %s123 = sphi 0, %s109
    %s131 = sphi 0, %s133
    %s134 = sphi 0, %s131
    %s135 = sphi 0, %s134
    %s151 = sphi 0, %s135
    %s159 = sphi 0, %s161
    %s162 = sphi 0, %s159
    %s163 = sphi 0, %s162
    %s179 = sphi 0, %s163
  $region4: #{dblock_forward.7} parent=0 // loop_header_branch
    %14 = sbr.rel (%p12) target = $region8
  $region5: #{dblock_forward.7} parent=0 // loop_body
    %s16 = ssub.s32 %s11, 1
    %s17 = ssub.s32 %s11, 2
    %s24 = sadd.s32 1, %s19
    %p25 = scmp.ge.s32.totalorder %s24, 1
    %s26 = scalar_select %p25, 0, %s24
    %s27 = sadd.s32 1, %s18
    %s28 = scalar_select %p25, %s27, %s18
    %p29 = scmp.ge.s32.totalorder %s28, 2
    %s30 = scalar_select %p29, 0, %s28
    %s31 = ssub.s32 %s18, %s30
    %s32 = ssub.s32 %s19, %s26
    %s33 = sor.u32 %s31, %s32
    %p34 = scmp.eq.s32.totalorder %s33, 0
    %s36 = sadd.s32 %s35, 1
    %s37 = scalar_select %p34, %s35, %s36
    %p40 = pneg %p34
    %p41 = scmp.eq.s32.totalorder %s11, 1
    %p42 = por %p40, %p41
    %p43 = scmp.ne.s32.totalorder %s35, %s38
    %p44 = scmp.eq.s32.totalorder %s11, 0
    %p45 = por %p43, %p44
    %p46 = scmp.ne.s32.totalorder %s35, %s38
    %p47 = scmp.eq.s32.totalorder %s16, 1
    %p48 = por %p46, %p47
    %p49 = scmp.ne.s32.totalorder %s38, %s39
    %p50 = scmp.eq.s32.totalorder %s16, 0
    %p51 = por %p49, %p50
    %p52 = scmp.ne.s32.totalorder %s38, %s39
    %p53 = scmp.eq.s32.totalorder %s17, 1
    %p54 = por %p52, %p53
    %p56 = scmp.ne.s32.totalorder %s39, %s55
    %p57 = scmp.eq.s32.totalorder %s17, 0
    %p58 = por %p56, %p57
    %s59 = ssub.s32 %s18, %s30
    %p60 = scmp.eq.s32.totalorder %s59, 0
    %s62 = sadd.s32 %s61, 1
    %s63 = scalar_select %p60, %s61, %s62
    %p66 = pneg %p60
    %p67 = scmp.eq.s32.totalorder %s11, 1
    %p68 = por %p66, %p67
    %p69 = scmp.ne.s32.totalorder %s61, %s64
    %p70 = scmp.eq.s32.totalorder %s11, 0
    %p71 = por %p69, %p70
    %p72 = scmp.ne.s32.totalorder %s61, %s64
    %p73 = scmp.eq.s32.totalorder %s16, 1
    %p74 = por %p72, %p73
    %p75 = scmp.ne.s32.totalorder %s64, %s65
    %p76 = scmp.eq.s32.totalorder %s16, 0
    %p77 = por %p75, %p76
    %p78 = scmp.ne.s32.totalorder %s64, %s65
    %p79 = scmp.eq.s32.totalorder %s17, 1
    %p80 = por %p78, %p79
    %p82 = scmp.ne.s32.totalorder %s65, %s81
    %p83 = scmp.eq.s32.totalorder %s17, 0
    %p84 = por %p82, %p83
    %s86 = sadd.s32 %s85, 1
    %p89 = scmp.eq.s32.totalorder %s11, 1
    %p90 = scmp.ne.s32.totalorder %s85, %s87
    %p91 = scmp.eq.s32.totalorder %s11, 0
    %p92 = por %p90, %p91
    %p93 = scmp.ne.s32.totalorder %s85, %s87
    %p94 = scmp.eq.s32.totalorder %s16, 1
    %p95 = por %p93, %p94
    %p96 = scmp.ne.s32.totalorder %s87, %s88
    %p97 = scmp.eq.s32.totalorder %s16, 0
    %p98 = por %p96, %p97
    %p99 = scmp.ne.s32.totalorder %s87, %s88
    %p100 = scmp.eq.s32.totalorder %s17, 1
    %p101 = por %p99, %p100
    %p103 = scmp.ne.s32.totalorder %s88, %s102
    %p104 = scmp.eq.s32.totalorder %s17, 0
    %p105 = por %p103, %p104
    %s107 = sadd.s32 %s106, 1
    %p110 = scmp.eq.s32.totalorder %s11, 1
    %p111 = scmp.ne.s32.totalorder %s106, %s108
    %p112 = scmp.eq.s32.totalorder %s11, 0
    %p113 = por %p111, %p112
    %p114 = scmp.ne.s32.totalorder %s106, %s108
    %p115 = scmp.eq.s32.totalorder %s16, 1
    %p116 = por %p114, %p115
    %p117 = scmp.ne.s32.totalorder %s108, %s109
    %p118 = scmp.eq.s32.totalorder %s16, 0
    %p119 = por %p117, %p118
    %p120 = scmp.ne.s32.totalorder %s108, %s109
    %p121 = scmp.eq.s32.totalorder %s17, 1
    %p122 = por %p120, %p121
    %p124 = scmp.ne.s32.totalorder %s109, %s123
    %p125 = scmp.eq.s32.totalorder %s17, 0
    %p126 = por %p124, %p125
    %s127 = ssub.s32 %s18, %s30
    %s128 = ssub.s32 %s19, %s26
    %s129 = sor.u32 %s127, %s128
    %p130 = scmp.eq.s32.totalorder %s129, 0
    %s132 = sadd.s32 %s131, 1
    %s133 = scalar_select %p130, %s131, %s132
    %p136 = pneg %p130
    %p137 = scmp.eq.s32.totalorder %s11, 1
    %p138 = por %p136, %p137
    %p139 = scmp.ne.s32.totalorder %s131, %s134
    %p140 = scmp.eq.s32.totalorder %s11, 0
    %p141 = por %p139, %p140
    %p142 = scmp.ne.s32.totalorder %s131, %s134
    %p143 = scmp.eq.s32.totalorder %s16, 1
    %p144 = por %p142, %p143
    %p145 = scmp.ne.s32.totalorder %s134, %s135
    %p146 = scmp.eq.s32.totalorder %s16, 0
    %p147 = por %p145, %p146
    %p148 = scmp.ne.s32.totalorder %s134, %s135
    %p149 = scmp.eq.s32.totalorder %s17, 1
    %p150 = por %p148, %p149
    %p152 = scmp.ne.s32.totalorder %s135, %s151
    %p153 = scmp.eq.s32.totalorder %s17, 0
    %p154 = por %p152, %p153
    %s155 = ssub.s32 %s18, %s30
    %s156 = ssub.s32 %s19, %s26
    %s157 = sor.u32 %s155, %s156
    %p158 = scmp.eq.s32.totalorder %s157, 0
    %s160 = sadd.s32 %s159, 1
    %s161 = scalar_select %p158, %s159, %s160
    %p164 = pneg %p158
    %p165 = scmp.eq.s32.totalorder %s11, 1
    %p166 = por %p164, %p165
    %p167 = scmp.ne.s32.totalorder %s159, %s162
    %p168 = scmp.eq.s32.totalorder %s11, 0
    %p169 = por %p167, %p168
    %p170 = scmp.ne.s32.totalorder %s159, %s162
    %p171 = scmp.eq.s32.totalorder %s16, 1
    %p172 = por %p170, %p171
    %p173 = scmp.ne.s32.totalorder %s162, %s163
    %p174 = scmp.eq.s32.totalorder %s16, 0
    %p175 = por %p173, %p174
    %p176 = scmp.ne.s32.totalorder %s162, %s163
    %p177 = scmp.eq.s32.totalorder %s17, 1
    %p178 = por %p176, %p177
    %p180 = scmp.ne.s32.totalorder %s163, %s179
    %p181 = scmp.eq.s32.totalorder %s17, 0
    %p182 = por %p180, %p181
    %p183 = scmp.le.s32.totalorder 1, %s11
    %p184 = scmp.lt.s32.totalorder %s11, 3
    %p185 = pnand %p183, %p184
    %p186 = pneg %p185
    // Predicated region
    $region9: #{dblock_forward.7} parent=5 // pred_check
      _
    $region10: #{dblock_forward.7} parent=5 // pred_check_branch
      %188 = sbr.rel (%p185) target = $region12
    $region11: #{dblock_forward.7} parent=5 // pred_region
      %s189 = ssub.s32 %s11, 1
      // Predicated region
      $region13: #{dblock_forward.7} parent=11 // pred_check
        %p190 = pneg %p98
      $region14: #{dblock_forward.7} parent=11 // pred_check_branch
        %192 = sbr.rel (%p190) target = $region16
      $region15: #{dblock_forward.7} parent=11 // pred_region
        _
      $region16: #{dblock_forward.7} parent=11 // pred_fallthru
        _
      // Predicated region
      $region17: #{dblock_forward.7} parent=11 // pred_check
        %p193 = pneg %p119
      $region18: #{dblock_forward.7} parent=11 // pred_check_branch
        %195 = sbr.rel (%p193) target = $region20
      $region19: #{dblock_forward.7} parent=11 // pred_region
        _
      $region20: #{dblock_forward.7} parent=11 // pred_fallthru
        _
    $region12: #{dblock_forward.7} parent=5 // pred_fallthru
      _
    %p196 = scmp.lt.s32.totalorder %s11, 2
    // Predicated region
    $region21: #{dblock_forward.7} parent=5 // pred_check
      %p197 = pneg %p196
    $region22: #{dblock_forward.7} parent=5 // pred_check_branch
      %199 = sbr.rel (%p197) target = $region24
    $region23: #{dblock_forward.7} parent=5 // pred_region
      // Predicated region
      $region25: #{dblock_forward.7} parent=23 // pred_check
        %p200 = pneg %p45
      $region26: #{dblock_forward.7} parent=23 // pred_check_branch
        %202 = sbr.rel (%p200) target = $region28
      $region27: #{dblock_forward.7} parent=23 // pred_region
        %p203 = scmp.lt.s32.totalorder %s18, 1
        %s204 = scalar_select %p203, %s18, 1
        %p205 = scmp.lt.s32.totalorder %s19, 0
        %s206 = scalar_select %p205, %s19, 0
        %s207 = sadd.s32 %s206, %s204
        %s208 = smul.addr %s207, 8
        %s209 = scalar_lea.vmem %s0, %s208
      $region28: #{dblock_forward.7} parent=23 // pred_fallthru
        _
      // Predicated region
      $region29: #{dblock_forward.7} parent=23 // pred_check
        %p210 = pneg %p71
      $region30: #{dblock_forward.7} parent=23 // pred_check_branch
        %212 = sbr.rel (%p210) target = $region32
      $region31: #{dblock_forward.7} parent=23 // pred_region
        %p213 = scmp.lt.s32.totalorder %s18, 1
        %s214 = scalar_select %p213, %s18, 1
        %s215 = smul.addr %s214, 8
        %s216 = scalar_lea.vmem %s1, %s215
      $region32: #{dblock_forward.7} parent=23 // pred_fallthru
        _
      // Predicated region
      $region33: #{dblock_forward.7} parent=23 // pred_check
        %p217 = pneg %p141
      $region34: #{dblock_forward.7} parent=23 // pred_check_branch
        %219 = sbr.rel (%p217) target = $region36
      $region35: #{dblock_forward.7} parent=23 // pred_region
        %p220 = scmp.lt.s32.totalorder %s18, 1
        %s221 = scalar_select %p220, %s18, 1
        %p222 = scmp.lt.s32.totalorder %s19, 0
        %s223 = scalar_select %p222, %s19, 0
        %s224 = sadd.s32 %s223, %s221
        %s225 = smul.addr %s224, 8
        %s226 = scalar_lea.vmem %s4, %s225
      $region36: #{dblock_forward.7} parent=23 // pred_fallthru
        _
    $region24: #{dblock_forward.7} parent=5 // pred_fallthru
      _
    %p227 = scmp.le.s32.totalorder 1, %s11
    %p228 = scmp.lt.s32.totalorder %s11, 3
    %p229 = pnand %p227, %p228
    %p230 = pneg %p229
    // Predicated region
    $region37: #{dblock_forward.7} parent=5 // pred_check
      _
    $region38: #{dblock_forward.7} parent=5 // pred_check_branch
      %232 = sbr.rel (%p229) target = $region40
    $region39: #{dblock_forward.7} parent=5 // pred_region
      %s233 = ssub.s32 %s11, 1
      %p234 = scmp.lt.s32.totalorder %s20, 1
      %s235 = scalar_select %p234, %s20, 1
      %p236 = scmp.lt.s32.totalorder %s21, 0
      %s237 = scalar_select %p236, %s21, 0
      %s238 = sadd.s32 %s237, %s235
      %s239 = smul.addr %s238, 8
      %s240 = scalar_lea.vmem %s0, %s239
      %p241 = pneg %p51
      %p242 = pneg %p48
      %p243 = scmp.lt.s32.totalorder %s20, 1
      %s244 = scalar_select %p243, %s20, 1
      %s245 = smul.addr %s244, 8
      %s246 = scalar_lea.vmem %s1, %s245
      %p247 = pneg %p77
      %p248 = pneg %p74
      %p249 = pneg %p98
      %p250 = pneg %p95
      %p251 = pneg %p119
      %p252 = pneg %p116
      %p253 = scmp.lt.s32.totalorder %s20, 1
      %s254 = scalar_select %p253, %s20, 1
      %p255 = scmp.lt.s32.totalorder %s21, 0
      %s256 = scalar_select %p255, %s21, 0
      %s257 = sadd.s32 %s256, %s254
      %s258 = smul.addr %s257, 8
      %s259 = scalar_lea.vmem %s4, %s258
      %p260 = pneg %p147
      %p261 = pneg %p144
      %p262 = pneg %p175
      %p263 = pneg %p172
      %p264 = scmp.lt.s32.totalorder %s20, 1
      %s265 = scalar_select %p264, %s20, 1
      %p266 = scmp.lt.s32.totalorder %s21, 0
      %s267 = scalar_select %p266, %s21, 0
      %s268 = sadd.s32 %s267, %s265
      %s269 = smul.addr %s268, 8
      %s270 = scalar_lea.vmem %s5, %s269
      %p271 = scmp.lt.s32.totalorder %s20, 1
      %s272 = scalar_select %p271, %s20, 1
      %p273 = scmp.lt.s32.totalorder %s21, 0
      %s274 = scalar_select %p273, %s21, 0
      %s275 = sadd.s32 %s274, %s272
      %s276 = smul.addr %s275, 8
      %s277 = scalar_lea.vmem %s0, %s276
      %p278 = scmp.lt.s32.totalorder %s20, 1
      %s279 = scalar_select %p278, %s20, 1
      %s280 = smul.addr %s279, 8
      %s281 = scalar_lea.vmem %s1, %s280
      %p282 = scmp.lt.s32.totalorder %s20, 1
      %s283 = scalar_select %p282, %s20, 1
      %p284 = scmp.lt.s32.totalorder %s21, 0
      %s285 = scalar_select %p284, %s21, 0
      %s286 = sadd.s32 %s285, %s283
      %s287 = smul.addr %s286, 8
      %s288 = scalar_lea.vmem %s4, %s287
      %p289 = scmp.lt.s32.totalorder %s20, 1
      %s290 = scalar_select %p289, %s20, 1
      %p291 = scmp.lt.s32.totalorder %s21, 0
      %s292 = scalar_select %p291, %s21, 0
      %s293 = sadd.s32 %s292, %s290
      %s294 = smul.addr %s293, 8
      %s295 = scalar_lea.vmem %s5, %s294
      %v296 = vld [vmem:[%s277] sm:$0xff]
      %v297 = vld [vmem:[%s281] sm:$0xff]
      %299 = vset.pattern.permute.xlu0 0
      %300 = vperm.xlu0 %299, %v297
      %v301 = vpop.permute.xlu0 %300
      %v303 = vmul.f32 %v296, %v301
      %v304 = vld [vmem:[%s2] sm:$0xff]
      %v305 = vld [vmem:[%s3] sm:$0xff]
      %307 = vset.pattern.permute.xlu0 0
      %308 = vperm.xlu0 %307, %v305
      %v309 = vpop.permute.xlu0 %308
      %vm311 = vcmask 64512
      %v313 = vsel %vm311, %v304, 0
      %315 = vmatprep.subr.mxu0 0.0
      %316 = vmatpush1.msra.mxu0 %v303
      %317 = vmatprep.subr.mxu0 0.0
      %318 = vmatpush1.msra.mxu0 0.0
      %319 = vmatprep.subr.mxu0 0.0
      %320 = vmatpush1.msra.mxu0 0.0
      %321 = vmatprep.subr.mxu0 0.0
      %322 = vmatpush1.msra.mxu0 0.0
      %323 = vmatprep.subr.mxu0 0.0
      %324 = vmatpush1.msra.mxu0 0.0
      %325 = vmatprep.subr.mxu0 0.0
      %326 = vmatpush1.msra.mxu0 0.0
      %327 = vmatprep.subr.mxu0 0.0
      %328 = vmatpush1.msra.mxu0 0.0
      %329 = vmatprep.subr.mxu0 0.0
      %330 = vmatpush1.msra.mxu0 0.0
      %331 = vmatprep.subr.mxu0 0.0
      %332 = vmatpush1.msra.mxu0 0.0
      %333 = vmatprep.subr.mxu0 0.0
      %334 = vmatpush1.msra.mxu0 0.0
      %335 = vmatprep.subr.mxu0 0.0
      %336 = vmatpush1.msra.mxu0 0.0
      %337 = vmatprep.subr.mxu0 0.0
      %338 = vmatpush1.msra.mxu0 0.0
      %339 = vmatprep.subr.mxu0 0.0
      %340 = vmatpush1.msra.mxu0 0.0
      %341 = vmatprep.subr.mxu0 0.0
      %342 = vmatpush1.msra.mxu0 0.0
      %343 = vmatprep.subr.mxu0 0.0
      %344 = vmatpush1.msra.mxu0 0.0
      %345 = vmatprep.subr.mxu0 0.0
      %346 = vmatpush1.msra.mxu0 0.0
      %347 = vmatprep.subr.mxu0 0.0
      %348 = vmatpush1.msra.mxu0 0.0
      %349 = vmatprep.subr.mxu0 0.0
      %350 = vmatpush1.msra.mxu0 0.0
      %351 = vmatprep.subr.mxu0 0.0
      %352 = vmatpush1.msra.mxu0 0.0
      %353 = vmatprep.subr.mxu0 0.0
      %354 = vmatpush1.msra.mxu0 0.0
      %355 = vmatprep.subr.mxu0 0.0
      %356 = vmatpush1.msra.mxu0 0.0
      %357 = vmatprep.subr.mxu0 0.0
      %358 = vmatpush1.msra.mxu0 0.0
      %359 = vmatprep.subr.mxu0 0.0
      %360 = vmatpush1.msra.mxu0 0.0
      %361 = vmatprep.subr.mxu0 0.0
      %362 = vmatpush1.msra.mxu0 0.0
      %363 = vmatprep.subr.mxu0 0.0
      %364 = vmatpush1.msra.mxu0 0.0
      %365 = vmatprep.subr.mxu0 0.0
      %366 = vmatpush1.msra.mxu0 0.0
      %367 = vmatprep.subr.mxu0 0.0
      %368 = vmatpush1.msra.mxu0 0.0
      %369 = vmatprep.subr.mxu0 0.0
      %370 = vmatpush1.msra.mxu0 0.0
      %371 = vmatprep.subr.mxu0 0.0
      %372 = vmatpush1.msra.mxu0 0.0
      %373 = vmatprep.subr.mxu0 0.0
      %374 = vmatpush1.msra.mxu0 0.0
      %375 = vmatprep.subr.mxu0 0.0
      %376 = vmatpush1.msra.mxu0 0.0
      %377 = vmatprep.subr.mxu0 0.0
      %378 = vmatpush1.msra.mxu0 0.0
      %379 = vmatprep.mubr.f32.mxu0 0.0
      %380 = vmatmul.mubr.f32.gmra.mrb[0].mxu0 %v313
      %v381 = vpop.f32.mrb[0].mxu0
      %v382 = vadd.f32 %v309, %v381
      %v383 = vpop.f32.mrb[0].mxu0
      %384 = vdwg.mxu0
      %v385 = vld [vmem:[%s288] sm:$0xff]
      %v386 = vadd.f32 %v382, %v385
      %v387 = vmax.f32 %v386, 0.0
      %vm388 = vcmask 523264
      %389 = vst.msk [vmem:[%s295] sm:$0xff] %vm388, %v387
      %p390 = scmp.lt.s32.totalorder %s20, 1
      %s391 = scalar_select %p390, %s20, 1
      %p392 = scmp.lt.s32.totalorder %s21, 0
      %s393 = scalar_select %p392, %s21, 0
      %s394 = sadd.s32 %s393, %s391
      %s395 = smul.addr %s394, 8
      %s396 = scalar_lea.vmem %s5, %s395
      // Predicated region
      $region41: #{dblock_forward.7} parent=39 // pred_check
        %p397 = pneg %p172
      $region42: #{dblock_forward.7} parent=39 // pred_check_branch
        %399 = sbr.rel (%p397) target = $region44
      $region43: #{dblock_forward.7} parent=39 // pred_region
        _
      $region44: #{dblock_forward.7} parent=39 // pred_fallthru
        _
    $region40: #{dblock_forward.7} parent=5 // pred_fallthru
      _
    %p400 = scmp.le.s32.totalorder 2, %s11
    // Predicated region
    $region45: #{dblock_forward.7} parent=5 // pred_check
      %p401 = pneg %p400
    $region46: #{dblock_forward.7} parent=5 // pred_check_branch
      %403 = sbr.rel (%p401) target = $region48
    $region47: #{dblock_forward.7} parent=5 // pred_region
      %s404 = ssub.s32 %s11, 2
      // Predicated region
      $region49: #{dblock_forward.7} parent=47 // pred_check
        %p405 = pneg %p178
      $region50: #{dblock_forward.7} parent=47 // pred_check_branch
        %407 = sbr.rel (%p405) target = $region52
      $region51: #{dblock_forward.7} parent=47 // pred_region
        %p408 = scmp.lt.s32.totalorder %s22, 1
        %s409 = scalar_select %p408, %s22, 1
        %p410 = scmp.lt.s32.totalorder %s23, 0
        %s411 = scalar_select %p410, %s23, 0
        %s412 = sadd.s32 %s411, %s409
        %s413 = smul.addr %s412, 8
        %s414 = scalar_lea.vmem %s5, %s413
      $region52: #{dblock_forward.7} parent=47 // pred_fallthru
        _
    $region48: #{dblock_forward.7} parent=5 // pred_fallthru
      _
  $region6: #{dblock_forward.7} parent=0 // loop_footer
    %s15 = sadd.s32 1, %s11
  $region7: #{dblock_forward.7} parent=0 // loop_footer_branch
    %10 = sbr.rel target = $region3
  $region8: #{dblock_forward.7} parent=0 // loop_exit
    _

// kernel: dblock_forward.5
$region0: #{dblock_forward.5}
  #allocation0 [shape = 'u32[]', space=smem, size = 0x4, offset = 0x4, fixed_abs, tag = 'smem constant byte address 0x4 - core index']
  #allocation1 [shape = 'u32[144,128]{1,0:T(1,128)}', space=vmem, size = 0x12000, scoped, tag = 'internal scratch']
  %s0 = inlined_call_operand.vmem [shape: f32[9,2,8,64], index: 0, kind: input, shape index: {}]
  %s1 = inlined_call_operand.vmem [shape: f32[9,8,8], index: 1, kind: input, shape index: {}]
  %s2 = inlined_call_operand.vmem [shape: f32[8,1], index: 2, kind: input, shape index: {}]
  %s3 = inlined_call_operand.vmem [shape: f32[2,8,64], index: 3, kind: output, shape index: {0}]
  %s4 = inlined_call_operand.vmem [shape: f32[2,8,1], index: 4, kind: output, shape index: {1}]
  %5 = xla_tuple %s3, %s4
  %s6 = sld [smem:[#allocation0]]
  $region95: #{dblock_forward.5} parent=0
    _
  %s8 = ssub.s32 1, %s6
  %s9 = scalar_select 0, %s8, %s6
  $region1: #{dblock_forward.5} parent=0
    #allocation2 [shape = 'u8[73728]{0}', space=vmem, size = 0x12000, scoped, tag = 'input window, operand 0']
    loop: start=0, step=1, limit=4
    $region2: #{dblock_forward.5} parent=1 // loop_pre_header
      _
    $region3: #{dblock_forward.5} parent=1 // loop_header
      %s11 = sphi 0, %s15
      %p12 = scmp.ge.s32.totalorder %s11, 4
      %s18 = sphi 0, %s30
      %s19 = sphi 0, %s26
      %s20 = sphi 0, %s18
      %s21 = sphi 0, %s19
      %s22 = sphi 0, %s20
      %s23 = sphi 0, %s21
      %s35 = sphi 0, %s37
      %s38 = sphi 0, %s35
      %s39 = sphi 0, %s38
      %s55 = sphi 0, %s39
      %s59 = sphi 0, %s59
      %s61 = sphi 0, %s59
      %s62 = sphi 0, %s61
      %s76 = sphi 0, %s62
      %s80 = sphi 0, %s80
      %s82 = sphi 0, %s80
      %s83 = sphi 0, %s82
      %s97 = sphi 0, %s83
      %s105 = sphi 0, %s107
      %s108 = sphi 0, %s105
      %s109 = sphi 0, %s108
      %s125 = sphi 0, %s109
      %s131 = sphi 0, %s133
      %s134 = sphi 0, %s131
      %s135 = sphi 0, %s134
      %s151 = sphi 0, %s135
    $region4: #{dblock_forward.5} parent=1 // loop_header_branch
      %14 = sbr.rel (%p12) target = $region8
    $region5: #{dblock_forward.5} parent=1 // loop_body
      %s16 = ssub.s32 %s11, 1
      %s17 = ssub.s32 %s11, 2
      %s24 = sadd.s32 1, %s19
      %p25 = scmp.ge.s32.totalorder %s24, 1
      %s26 = scalar_select %p25, 0, %s24
      %s27 = sadd.s32 1, %s18
      %s28 = scalar_select %p25, %s27, %s18
      %p29 = scmp.ge.s32.totalorder %s28, 2
      %s30 = scalar_select %p29, 0, %s28
      %s31 = ssub.s32 %s18, %s30
      %s32 = ssub.s32 %s19, %s26
      %s33 = sor.u32 %s31, %s32
      %p34 = scmp.eq.s32.totalorder %s33, 0
      %s36 = sadd.s32 %s35, 1
      %s37 = scalar_select %p34, %s35, %s36
      %p40 = pneg %p34
      %p41 = scmp.eq.s32.totalorder %s11, 1
      %p42 = por %p40, %p41
      %p43 = scmp.ne.s32.totalorder %s35, %s38
      %p44 = scmp.eq.s32.totalorder %s11, 0
      %p45 = por %p43, %p44
      %p46 = scmp.ne.s32.totalorder %s35, %s38
      %p47 = scmp.eq.s32.totalorder %s16, 1
      %p48 = por %p46, %p47
      %p49 = scmp.ne.s32.totalorder %s38, %s39
      %p50 = scmp.eq.s32.totalorder %s16, 0
      %p51 = por %p49, %p50
      %p52 = scmp.ne.s32.totalorder %s38, %s39
      %p53 = scmp.eq.s32.totalorder %s17, 1
      %p54 = por %p52, %p53
      %p56 = scmp.ne.s32.totalorder %s39, %s55
      %p57 = scmp.eq.s32.totalorder %s17, 0
      %p58 = por %p56, %p57
      %s60 = sadd.s32 %s59, 1
      %p63 = scmp.eq.s32.totalorder %s11, 1
      %p64 = scmp.ne.s32.totalorder %s59, %s61
      %p65 = scmp.eq.s32.totalorder %s11, 0
      %p66 = por %p64, %p65
      %p67 = scmp.ne.s32.totalorder %s59, %s61
      %p68 = scmp.eq.s32.totalorder %s16, 1
      %p69 = por %p67, %p68
      %p70 = scmp.ne.s32.totalorder %s61, %s62
      %p71 = scmp.eq.s32.totalorder %s16, 0
      %p72 = por %p70, %p71
      %p73 = scmp.ne.s32.totalorder %s61, %s62
      %p74 = scmp.eq.s32.totalorder %s17, 1
      %p75 = por %p73, %p74
      %p77 = scmp.ne.s32.totalorder %s62, %s76
      %p78 = scmp.eq.s32.totalorder %s17, 0
      %p79 = por %p77, %p78
      %s81 = sadd.s32 %s80, 1
      %p84 = scmp.eq.s32.totalorder %s11, 1
      %p85 = scmp.ne.s32.totalorder %s80, %s82
      %p86 = scmp.eq.s32.totalorder %s11, 0
      %p87 = por %p85, %p86
      %p88 = scmp.ne.s32.totalorder %s80, %s82
      %p89 = scmp.eq.s32.totalorder %s16, 1
      %p90 = por %p88, %p89
      %p91 = scmp.ne.s32.totalorder %s82, %s83
      %p92 = scmp.eq.s32.totalorder %s16, 0
      %p93 = por %p91, %p92
      %p94 = scmp.ne.s32.totalorder %s82, %s83
      %p95 = scmp.eq.s32.totalorder %s17, 1
      %p96 = por %p94, %p95
      %p98 = scmp.ne.s32.totalorder %s83, %s97
      %p99 = scmp.eq.s32.totalorder %s17, 0
      %p100 = por %p98, %p99
      %s101 = ssub.s32 %s18, %s30
      %s102 = ssub.s32 %s19, %s26
      %s103 = sor.u32 %s101, %s102
      %p104 = scmp.eq.s32.totalorder %s103, 0
      %s106 = sadd.s32 %s105, 1
      %s107 = scalar_select %p104, %s105, %s106
      %p110 = pneg %p104
      %p111 = scmp.eq.s32.totalorder %s11, 1
      %p112 = por %p110, %p111
      %p113 = scmp.ne.s32.totalorder %s105, %s108
      %p114 = scmp.eq.s32.totalorder %s11, 0
      %p115 = por %p113, %p114
      %p116 = scmp.ne.s32.totalorder %s105, %s108
      %p117 = scmp.eq.s32.totalorder %s16, 1
      %p118 = por %p116, %p117
      %p119 = scmp.ne.s32.totalorder %s108, %s109
      %p120 = scmp.eq.s32.totalorder %s16, 0
      %p121 = por %p119, %p120
      %p122 = scmp.ne.s32.totalorder %s108, %s109
      %p123 = scmp.eq.s32.totalorder %s17, 1
      %p124 = por %p122, %p123
      %p126 = scmp.ne.s32.totalorder %s109, %s125
      %p127 = scmp.eq.s32.totalorder %s17, 0
      %p128 = por %p126, %p127
      %s129 = ssub.s32 %s18, %s30
      %p130 = scmp.eq.s32.totalorder %s129, 0
      %s132 = sadd.s32 %s131, 1
      %s133 = scalar_select %p130, %s131, %s132
      %p136 = pneg %p130
      %p137 = scmp.eq.s32.totalorder %s11, 1
      %p138 = por %p136, %p137
      %p139 = scmp.ne.s32.totalorder %s131, %s134
      %p140 = scmp.eq.s32.totalorder %s11, 0
      %p141 = por %p139, %p140
      %p142 = scmp.ne.s32.totalorder %s131, %s134
      %p143 = scmp.eq.s32.totalorder %s16, 1
      %p144 = por %p142, %p143
      %p145 = scmp.ne.s32.totalorder %s134, %s135
      %p146 = scmp.eq.s32.totalorder %s16, 0
      %p147 = por %p145, %p146
      %p148 = scmp.ne.s32.totalorder %s134, %s135
      %p149 = scmp.eq.s32.totalorder %s17, 1
      %p150 = por %p148, %p149
      %p152 = scmp.ne.s32.totalorder %s135, %s151
      %p153 = scmp.eq.s32.totalorder %s17, 0
      %p154 = por %p152, %p153
      %p155 = scmp.le.s32.totalorder 1, %s11
      %p156 = scmp.lt.s32.totalorder %s11, 3
      %p157 = pnand %p155, %p156
      %p158 = pneg %p157
      // Predicated region
      $region9: #{dblock_forward.5} parent=5 // pred_check
        _
      $region10: #{dblock_forward.5} parent=5 // pred_check_branch
        %160 = sbr.rel (%p157) target = $region12
      $region11: #{dblock_forward.5} parent=5 // pred_region
        %s161 = ssub.s32 %s11, 1
        // Predicated region
        $region13: #{dblock_forward.5} parent=11 // pred_check
          %p162 = pneg %p72
        $region14: #{dblock_forward.5} parent=11 // pred_check_branch
          %164 = sbr.rel (%p162) target = $region16
        $region15: #{dblock_forward.5} parent=11 // pred_region
          _
        $region16: #{dblock_forward.5} parent=11 // pred_fallthru
          _
        // Predicated region
        $region17: #{dblock_forward.5} parent=11 // pred_check
          %p165 = pneg %p93
        $region18: #{dblock_forward.5} parent=11 // pred_check_branch
          %167 = sbr.rel (%p165) target = $region20
        $region19: #{dblock_forward.5} parent=11 // pred_region
          _
        $region20: #{dblock_forward.5} parent=11 // pred_fallthru
          _
      $region12: #{dblock_forward.5} parent=5 // pred_fallthru
        _
      %p168 = scmp.lt.s32.totalorder %s11, 2
      // Predicated region
      $region21: #{dblock_forward.5} parent=5 // pred_check
        %p169 = pneg %p168
      $region22: #{dblock_forward.5} parent=5 // pred_check_branch
        %171 = sbr.rel (%p169) target = $region24
      $region23: #{dblock_forward.5} parent=5 // pred_region
        // Predicated region
        $region25: #{dblock_forward.5} parent=23 // pred_check
          %p172 = pneg %p45
        $region26: #{dblock_forward.5} parent=23 // pred_check_branch
          %174 = sbr.rel (%p172) target = $region28
        $region27: #{dblock_forward.5} parent=23 // pred_region
          %s175 = sand.u32 %s35, 1
          %s176 = sand.u32 %s35, 1
          %s177 = smul.addr %s176, 72
          %s178 = scalar_lea.vmem [#allocation2], %s177
          %s179 = sadd.s32 %s19, %s18
          %s180 = smul.addr %s179, 8
          %s181 = scalar_lea.vmem %s0, %s180
          // Predicated region
          $region29: #{dblock_forward.5} parent=27 // pred_check
            _
          $region30: #{dblock_forward.5} parent=27 // pred_check_branch
            %183 = sbr.rel (0) target = $region32
          $region31: #{dblock_forward.5} parent=27 // pred_region
            // Predicated region
            $region33: #{dblock_forward.5} parent=31 // pred_check
              _
            $region34: #{dblock_forward.5} parent=31 // pred_check_branch
              %185 = sbr.rel (0) target = $region36
            $region35: #{dblock_forward.5} parent=31 // pred_region
              // Predicated region
              $region48: #{dblock_forward.5} parent=35 // pred_check
                _
              $region49: #{dblock_forward.5} parent=35 // pred_check_branch
                %216 = sbr.rel (0) target = $region51
              $region50: #{dblock_forward.5} parent=35 // pred_region
                loop: start=0, step=1, limit=1
                $region52: #{dblock_forward.5} parent=50 // loop_pre_header
                  _
                $region53: #{dblock_forward.5} parent=50 // loop_header
                  %s218 = sphi 0, %s222
                  %p219 = scmp.ge.s32.totalorder %s218, 1
                  %s223 = sphi %s181, %s181
                  %s224 = sphi %s178, %s178
                $region54: #{dblock_forward.5} parent=50 // loop_header_branch
                  %221 = sbr.rel (%p219) target = $region58
                $region55: #{dblock_forward.5} parent=50 // loop_body
                  %v225 = vld [vmem:[%s223] sm:$0xff]
                  %226 = vst [vmem:[%s224] sm:$0xff] %v225
                  %v227 = vld [vmem:[%s223 + $0x10] sm:$0xff]
                  %228 = vst [vmem:[%s224 + $0x8] sm:$0xff] %v227
                  %v229 = vld [vmem:[%s223 + $0x20] sm:$0xff]
                  %230 = vst [vmem:[%s224 + $0x10] sm:$0xff] %v229
                  %v231 = vld [vmem:[%s223 + $0x30] sm:$0xff]
                  %232 = vst [vmem:[%s224 + $0x18] sm:$0xff] %v231
                  %v233 = vld [vmem:[%s223 + $0x40] sm:$0xff]
                  %234 = vst [vmem:[%s224 + $0x20] sm:$0xff] %v233
                  %v235 = vld [vmem:[%s223 + $0x50] sm:$0xff]
                  %236 = vst [vmem:[%s224 + $0x28] sm:$0xff] %v235
                  %v237 = vld [vmem:[%s223 + $0x60] sm:$0xff]
                  %238 = vst [vmem:[%s224 + $0x30] sm:$0xff] %v237
                  %v239 = vld [vmem:[%s223 + $0x70] sm:$0xff]
                  %240 = vst [vmem:[%s224 + $0x38] sm:$0xff] %v239
                  %v241 = vld [vmem:[%s223 + $0x80] sm:$0xff]
                  %242 = vst [vmem:[%s224 + $0x40] sm:$0xff] %v241
                $region56: #{dblock_forward.5} parent=50 // loop_footer
                  %s222 = sadd.s32 1, %s218
                $region57: #{dblock_forward.5} parent=50 // loop_footer_branch
                  %217 = sbr.rel target = $region53
                $region58: #{dblock_forward.5} parent=50 // loop_exit
                  _
              $region51: #{dblock_forward.5} parent=35 // pred_fallthru
                _
              // Predicated region
              $region59: #{dblock_forward.5} parent=35 // pred_check
                _
              $region60: #{dblock_forward.5} parent=35 // pred_check_branch
                %244 = sbr.rel target = $region62
              $region61: #{dblock_forward.5} parent=35 // pred_region
                _
              $region62: #{dblock_forward.5} parent=35 // pred_fallthru
                _
            $region36: #{dblock_forward.5} parent=31 // pred_fallthru
              _
            // Predicated region
            $region37: #{dblock_forward.5} parent=31 // pred_check
              _
            $region38: #{dblock_forward.5} parent=31 // pred_check_branch
              %187 = sbr.rel target = $region40
            $region39: #{dblock_forward.5} parent=31 // pred_region
              loop: start=0, step=1, limit=1
              $region41: #{dblock_forward.5} parent=39 // loop_pre_header
                _
              $region42: #{dblock_forward.5} parent=39 // loop_header
                %s190 = sphi 0, %s194
                %p191 = scmp.ge.s32.totalorder %s190, 1
                %s195 = sphi %s181, %s181
                %s196 = sphi %s178, %s178
              $region43: #{dblock_forward.5} parent=39 // loop_header_branch
                %193 = sbr.rel (%p191) target = $region47
              $region44: #{dblock_forward.5} parent=39 // loop_body
                %v197 = vld [vmem:[%s195] sm:$0xff]
                %198 = vst [vmem:[%s196] sm:$0xff] %v197
                %v199 = vld [vmem:[%s195 + $0x10] sm:$0xff]
                %200 = vst [vmem:[%s196 + $0x8] sm:$0xff] %v199
                %v201 = vld [vmem:[%s195 + $0x20] sm:$0xff]
                %202 = vst [vmem:[%s196 + $0x10] sm:$0xff] %v201
                %v203 = vld [vmem:[%s195 + $0x30] sm:$0xff]
                %204 = vst [vmem:[%s196 + $0x18] sm:$0xff] %v203
                %v205 = vld [vmem:[%s195 + $0x40] sm:$0xff]
                %206 = vst [vmem:[%s196 + $0x20] sm:$0xff] %v205
                %v207 = vld [vmem:[%s195 + $0x50] sm:$0xff]
                %208 = vst [vmem:[%s196 + $0x28] sm:$0xff] %v207
                %v209 = vld [vmem:[%s195 + $0x60] sm:$0xff]
                %210 = vst [vmem:[%s196 + $0x30] sm:$0xff] %v209
                %v211 = vld [vmem:[%s195 + $0x70] sm:$0xff]
                %212 = vst [vmem:[%s196 + $0x38] sm:$0xff] %v211
                %v213 = vld [vmem:[%s195 + $0x80] sm:$0xff]
                %214 = vst [vmem:[%s196 + $0x40] sm:$0xff] %v213
              $region45: #{dblock_forward.5} parent=39 // loop_footer
                %s194 = sadd.s32 1, %s190
              $region46: #{dblock_forward.5} parent=39 // loop_footer_branch
                %189 = sbr.rel target = $region42
              $region47: #{dblock_forward.5} parent=39 // loop_exit
                _
            $region40: #{dblock_forward.5} parent=31 // pred_fallthru
              _
          $region32: #{dblock_forward.5} parent=27 // pred_fallthru
            _
          %245 = vnop
        $region28: #{dblock_forward.5} parent=23 // pred_fallthru
          _
      $region24: #{dblock_forward.5} parent=5 // pred_fallthru
        _
      %p246 = scmp.le.s32.totalorder 1, %s11
      %p247 = scmp.lt.s32.totalorder %s11, 3
      %p248 = pnand %p246, %p247
      %p249 = pneg %p248
      // Predicated region
      $region63: #{dblock_forward.5} parent=5 // pred_check
        _
      $region64: #{dblock_forward.5} parent=5 // pred_check_branch
        %251 = sbr.rel (%p248) target = $region66
      $region65: #{dblock_forward.5} parent=5 // pred_region
        %s252 = ssub.s32 %s11, 1
        %s253 = sand.u32 %s38, 1
        %s254 = sand.u32 %s38, 1
        %s255 = smul.addr %s254, 72
        %s256 = scalar_lea.vmem [#allocation2], %s255
        // Predicated region
        $region67: #{dblock_forward.5} parent=65 // pred_check
          %p257 = pneg %p51
        $region68: #{dblock_forward.5} parent=65 // pred_check_branch
          %259 = sbr.rel (%p257) target = $region70
        $region69: #{dblock_forward.5} parent=65 // pred_region
          _
        $region70: #{dblock_forward.5} parent=65 // pred_fallthru
          _
        %s260 = sand.u32 %s38, 1
        %s261 = sand.u32 %s38, 1
        %s262 = smul.addr %s261, 72
        %s263 = scalar_lea.vmem [#allocation2], %s262
        %p264 = pneg %p51
        %p265 = pneg %p48
        %p266 = pneg %p72
        %p267 = pneg %p69
        %p268 = pneg %p93
        %p269 = pneg %p90
        %p270 = pneg %p121
        %p271 = pneg %p118
        %p272 = scmp.lt.s32.totalorder %s20, 1
        %s273 = scalar_select %p272, %s20, 1
        %p274 = scmp.lt.s32.totalorder %s21, 0
        %s275 = scalar_select %p274, %s21, 0
        %s276 = sadd.s32 %s275, %s273
        %s277 = smul.addr %s276, 8
        %s278 = scalar_lea.vmem %s3, %s277
        %p279 = pneg %p147
        %p280 = pneg %p144
        %p281 = scmp.lt.s32.totalorder %s20, 1
        %s282 = scalar_select %p281, %s20, 1
        %s283 = smul.addr %s282, 8
        %s284 = scalar_lea.vmem %s4, %s283
        %p285 = scmp.lt.s32.totalorder %s20, 1
        %s286 = scalar_select %p285, %s20, 1
        %p287 = scmp.lt.s32.totalorder %s21, 0
        %s288 = scalar_select %p287, %s21, 0
        %s289 = sadd.s32 %s288, %s286
        %s290 = smul.addr %s289, 8
        %s291 = scalar_lea.vmem %s3, %s290
        %p292 = scmp.lt.s32.totalorder %s20, 1
        %s293 = scalar_select %p292, %s20, 1
        %s294 = smul.addr %s293, 8
        %s295 = scalar_lea.vmem %s4, %s294
        %v296 = vld [vmem:[%s1] sm:$0xff]
        %v297 = vld [vmem:[%s256] sm:$0xff]
        %s298 = scalar_lea.vmem %s1, 8
        %v299 = vld [vmem:[%s298] sm:$0xff]
        %s300 = scalar_lea.vmem %s256, 8 [#allocation2]
        %v301 = vld [vmem:[%s300] sm:$0xff]
        %vm302 = vcmask 64512
        %v304 = vsel %vm302, %v299, 0
        %306 = vmatprep.subr.mxu0 0.0
        %307 = vmatpush1.msra.mxu0 %v301
        %308 = vmatprep.subr.mxu0 0.0
        %309 = vmatpush1.msra.mxu0 0.0
        %310 = vmatprep.subr.mxu0 0.0
        %311 = vmatpush1.msra.mxu0 0.0
        %312 = vmatprep.subr.mxu0 0.0
        %313 = vmatpush1.msra.mxu0 0.0
        %314 = vmatprep.subr.mxu0 0.0
        %315 = vmatpush1.msra.mxu0 0.0
        %316 = vmatprep.subr.mxu0 0.0
        %317 = vmatpush1.msra.mxu0 0.0
        %318 = vmatprep.subr.mxu0 0.0
        %319 = vmatpush1.msra.mxu0 0.0
        %320 = vmatprep.subr.mxu0 0.0
        %321 = vmatpush1.msra.mxu0 0.0
        %322 = vmatprep.subr.mxu0 0.0
        %323 = vmatpush1.msra.mxu0 0.0
        %324 = vmatprep.subr.mxu0 0.0
        %325 = vmatpush1.msra.mxu0 0.0
        %326 = vmatprep.subr.mxu0 0.0
        %327 = vmatpush1.msra.mxu0 0.0
        %328 = vmatprep.subr.mxu0 0.0
        %329 = vmatpush1.msra.mxu0 0.0
        %330 = vmatprep.subr.mxu0 0.0
        %331 = vmatpush1.msra.mxu0 0.0
        %332 = vmatprep.subr.mxu0 0.0
        %333 = vmatpush1.msra.mxu0 0.0
        %334 = vmatprep.subr.mxu0 0.0
        %335 = vmatpush1.msra.mxu0 0.0
        %336 = vmatprep.subr.mxu0 0.0
        %337 = vmatpush1.msra.mxu0 0.0
        %338 = vmatprep.subr.mxu0 0.0
        %339 = vmatpush1.msra.mxu0 0.0
        %340 = vmatprep.subr.mxu0 0.0
        %341 = vmatpush1.msra.mxu0 0.0
        %342 = vmatprep.subr.mxu0 0.0
        %343 = vmatpush1.msra.mxu0 0.0
        %344 = vmatprep.subr.mxu0 0.0
        %345 = vmatpush1.msra.mxu0 0.0
        %346 = vmatprep.subr.mxu0 0.0
        %347 = vmatpush1.msra.mxu0 0.0
        %348 = vmatprep.subr.mxu0 0.0
        %349 = vmatpush1.msra.mxu0 0.0
        %350 = vmatprep.subr.mxu0 0.0
        %351 = vmatpush1.msra.mxu0 0.0
        %352 = vmatprep.subr.mxu0 0.0
        %353 = vmatpush1.msra.mxu0 0.0
        %354 = vmatprep.subr.mxu0 0.0
        %355 = vmatpush1.msra.mxu0 0.0
        %356 = vmatprep.subr.mxu0 0.0
        %357 = vmatpush1.msra.mxu0 0.0
        %358 = vmatprep.subr.mxu0 0.0
        %359 = vmatpush1.msra.mxu0 0.0
        %360 = vmatprep.subr.mxu0 0.0
        %361 = vmatpush1.msra.mxu0 0.0
        %362 = vmatprep.subr.mxu0 0.0
        %363 = vmatpush1.msra.mxu0 0.0
        %364 = vmatprep.subr.mxu0 0.0
        %365 = vmatpush1.msra.mxu0 0.0
        %366 = vmatprep.subr.mxu0 0.0
        %367 = vmatpush1.msra.mxu0 0.0
        %368 = vmatprep.subr.mxu0 0.0
        %369 = vmatpush1.msra.mxu0 0.0
        %370 = vmatprep.mubr.f32.mxu0 0.0
        %371 = vmatmul.mubr.f32.gmra.mrb[0].mxu0 %v304
        %v372 = vpop.f32.mrb[0].mxu0
        %v373 = vadd.f32 0.0, %v372
        %v374 = vpop.f32.mrb[0].mxu0
        %375 = vdwg.mxu0
        %v377 = vsel %vm302, %v296, 0
        %379 = vmatprep.subr.mxu0 0.0
        %380 = vmatpush1.msra.mxu0 %v297
        %381 = vmatprep.subr.mxu0 0.0
        %382 = vmatpush1.msra.mxu0 0.0
        %383 = vmatprep.subr.mxu0 0.0
        %384 = vmatpush1.msra.mxu0 0.0
        %385 = vmatprep.subr.mxu0 0.0
        %386 = vmatpush1.msra.mxu0 0.0
        %387 = vmatprep.subr.mxu0 0.0
        %388 = vmatpush1.msra.mxu0 0.0
        %389 = vmatprep.subr.mxu0 0.0
        %390 = vmatpush1.msra.mxu0 0.0
        %391 = vmatprep.subr.mxu0 0.0
        %392 = vmatpush1.msra.mxu0 0.0
        %393 = vmatprep.subr.mxu0 0.0
        %394 = vmatpush1.msra.mxu0 0.0
        %395 = vmatprep.subr.mxu0 0.0
        %396 = vmatpush1.msra.mxu0 0.0
        %397 = vmatprep.subr.mxu0 0.0
        %398 = vmatpush1.msra.mxu0 0.0
        %399 = vmatprep.subr.mxu0 0.0
        %400 = vmatpush1.msra.mxu0 0.0
        %401 = vmatprep.subr.mxu0 0.0
        %402 = vmatpush1.msra.mxu0 0.0
        %403 = vmatprep.subr.mxu0 0.0
        %404 = vmatpush1.msra.mxu0 0.0
        %405 = vmatprep.subr.mxu0 0.0
        %406 = vmatpush1.msra.mxu0 0.0
        %407 = vmatprep.subr.mxu0 0.0
        %408 = vmatpush1.msra.mxu0 0.0
        %409 = vmatprep.subr.mxu0 0.0
        %410 = vmatpush1.msra.mxu0 0.0
        %411 = vmatprep.subr.mxu0 0.0
        %412 = vmatpush1.msra.mxu0 0.0
        %413 = vmatprep.subr.mxu0 0.0
        %414 = vmatpush1.msra.mxu0 0.0
        %415 = vmatprep.subr.mxu0 0.0
        %416 = vmatpush1.msra.mxu0 0.0
        %417 = vmatprep.subr.mxu0 0.0
        %418 = vmatpush1.msra.mxu0 0.0
        %419 = vmatprep.subr.mxu0 0.0
        %420 = vmatpush1.msra.mxu0 0.0
        %421 = vmatprep.subr.mxu0 0.0
        %422 = vmatpush1.msra.mxu0 0.0
        %423 = vmatprep.subr.mxu0 0.0
        %424 = vmatpush1.msra.mxu0 0.0
        %425 = vmatprep.subr.mxu0 0.0
        %426 = vmatpush1.msra.mxu0 0.0
        %427 = vmatprep.subr.mxu0 0.0
        %428 = vmatpush1.msra.mxu0 0.0
        %429 = vmatprep.subr.mxu0 0.0
        %430 = vmatpush1.msra.mxu0 0.0
        %431 = vmatprep.subr.mxu0 0.0
        %432 = vmatpush1.msra.mxu0 0.0
        %433 = vmatprep.subr.mxu0 0.0
        %434 = vmatpush1.msra.mxu0 0.0
        %435 = vmatprep.subr.mxu0 0.0
        %436 = vmatpush1.msra.mxu0 0.0
        %437 = vmatprep.subr.mxu0 0.0
        %438 = vmatpush1.msra.mxu0 0.0
        %439 = vmatprep.subr.mxu0 0.0
        %440 = vmatpush1.msra.mxu0 0.0
        %441 = vmatprep.subr.mxu0 0.0
        %442 = vmatpush1.msra.mxu0 0.0
        %443 = vmatprep.mubr.f32.mxu0 0.0
        %444 = vmatmul.mubr.f32.gmra.mrb[0].mxu0 %v377
        %v445 = vpop.f32.mrb[0].mxu0
        %v446 = vadd.f32 %v373, %v445
        %v447 = vpop.f32.mrb[0].mxu0
        %448 = vdwg.mxu0
        %s449 = scalar_lea.vmem %s1, 16
        %v450 = vld [vmem:[%s449] sm:$0xff]
        %s451 = scalar_lea.vmem %s256, 16 [#allocation2]
        %v452 = vld [vmem:[%s451] sm:$0xff]
        %v454 = vsel %vm302, %v450, 0
        %456 = vmatprep.subr.mxu0 0.0
        %457 = vmatpush1.msra.mxu0 %v452
        %458 = vmatprep.subr.mxu0 0.0
        %459 = vmatpush1.msra.mxu0 0.0
        %460 = vmatprep.subr.mxu0 0.0
        %461 = vmatpush1.msra.mxu0 0.0
        %462 = vmatprep.subr.mxu0 0.0
        %463 = vmatpush1.msra.mxu0 0.0
        %464 = vmatprep.subr.mxu0 0.0
        %465 = vmatpush1.msra.mxu0 0.0
        %466 = vmatprep.subr.mxu0 0.0
        %467 = vmatpush1.msra.mxu0 0.0
        %468 = vmatprep.subr.mxu0 0.0
        %469 = vmatpush1.msra.mxu0 0.0
        %470 = vmatprep.subr.mxu0 0.0
        %471 = vmatpush1.msra.mxu0 0.0
        %472 = vmatprep.subr.mxu0 0.0
        %473 = vmatpush1.msra.mxu0 0.0
        %474 = vmatprep.subr.mxu0 0.0
        %475 = vmatpush1.msra.mxu0 0.0
        %476 = vmatprep.subr.mxu0 0.0
        %477 = vmatpush1.msra.mxu0 0.0
        %478 = vmatprep.subr.mxu0 0.0
        %479 = vmatpush1.msra.mxu0 0.0
        %480 = vmatprep.subr.mxu0 0.0
        %481 = vmatpush1.msra.mxu0 0.0
        %482 = vmatprep.subr.mxu0 0.0
        %483 = vmatpush1.msra.mxu0 0.0
        %484 = vmatprep.subr.mxu0 0.0
        %485 = vmatpush1.msra.mxu0 0.0
        %486 = vmatprep.subr.mxu0 0.0
        %487 = vmatpush1.msra.mxu0 0.0
        %488 = vmatprep.subr.mxu0 0.0
        %489 = vmatpush1.msra.mxu0 0.0
        %490 = vmatprep.subr.mxu0 0.0
        %491 = vmatpush1.msra.mxu0 0.0
        %492 = vmatprep.subr.mxu0 0.0
        %493 = vmatpush1.msra.mxu0 0.0
        %494 = vmatprep.subr.mxu0 0.0
        %495 = vmatpush1.msra.mxu0 0.0
        %496 = vmatprep.subr.mxu0 0.0
        %497 = vmatpush1.msra.mxu0 0.0
        %498 = vmatprep.subr.mxu0 0.0
        %499 = vmatpush1.msra.mxu0 0.0
        %500 = vmatprep.subr.mxu0 0.0
        %501 = vmatpush1.msra.mxu0 0.0
        %502 = vmatprep.subr.mxu0 0.0
        %503 = vmatpush1.msra.mxu0 0.0
        %504 = vmatprep.subr.mxu0 0.0
        %505 = vmatpush1.msra.mxu0 0.0
        %506 = vmatprep.subr.mxu0 0.0
        %507 = vmatpush1.msra.mxu0 0.0
        %508 = vmatprep.subr.mxu0 0.0
        %509 = vmatpush1.msra.mxu0 0.0
        %510 = vmatprep.subr.mxu0 0.0
        %511 = vmatpush1.msra.mxu0 0.0
        %512 = vmatprep.subr.mxu0 0.0
        %513 = vmatpush1.msra.mxu0 0.0
        %514 = vmatprep.subr.mxu0 0.0
        %515 = vmatpush1.msra.mxu0 0.0
        %516 = vmatprep.subr.mxu0 0.0
        %517 = vmatpush1.msra.mxu0 0.0
        %518 = vmatprep.subr.mxu0 0.0
        %519 = vmatpush1.msra.mxu0 0.0
        %520 = vmatprep.mubr.f32.mxu0 0.0
        %521 = vmatmul.mubr.f32.gmra.mrb[0].mxu0 %v454
        %v522 = vpop.f32.mrb[0].mxu0
        %v523 = vadd.f32 0.0, %v522
        %v524 = vpop.f32.mrb[0].mxu0
        %525 = vdwg.mxu0
        %v526 = vadd.f32 %v446, %v523
        %s527 = scalar_lea.vmem %s1, 24
        %v528 = vld [vmem:[%s527] sm:$0xff]
        %s529 = scalar_lea.vmem %s256, 24 [#allocation2]
        %v530 = vld [vmem:[%s529] sm:$0xff]
        %v532 = vsel %vm302, %v528, 0
        %534 = vmatprep.subr.mxu0 0.0
        %535 = vmatpush1.msra.mxu0 %v530
        %536 = vmatprep.subr.mxu0 0.0
        %537 = vmatpush1.msra.mxu0 0.0
        %538 = vmatprep.subr.mxu0 0.0
        %539 = vmatpush1.msra.mxu0 0.0
        %540 = vmatprep.subr.mxu0 0.0
        %541 = vmatpush1.msra.mxu0 0.0
        %542 = vmatprep.subr.mxu0 0.0
        %543 = vmatpush1.msra.mxu0 0.0
        %544 = vmatprep.subr.mxu0 0.0
        %545 = vmatpush1.msra.mxu0 0.0
        %546 = vmatprep.subr.mxu0 0.0
        %547 = vmatpush1.msra.mxu0 0.0
        %548 = vmatprep.subr.mxu0 0.0
        %549 = vmatpush1.msra.mxu0 0.0
        %550 = vmatprep.subr.mxu0 0.0
        %551 = vmatpush1.msra.mxu0 0.0
        %552 = vmatprep.subr.mxu0 0.0
        %553 = vmatpush1.msra.mxu0 0.0
        %554 = vmatprep.subr.mxu0 0.0
        %555 = vmatpush1.msra.mxu0 0.0
        %556 = vmatprep.subr.mxu0 0.0
        %557 = vmatpush1.msra.mxu0 0.0
        %558 = vmatprep.subr.mxu0 0.0
        %559 = vmatpush1.msra.mxu0 0.0
        %560 = vmatprep.subr.mxu0 0.0
        %561 = vmatpush1.msra.mxu0 0.0
        %562 = vmatprep.subr.mxu0 0.0
        %563 = vmatpush1.msra.mxu0 0.0
        %564 = vmatprep.subr.mxu0 0.0
        %565 = vmatpush1.msra.mxu0 0.0
        %566 = vmatprep.subr.mxu0 0.0
        %567 = vmatpush1.msra.mxu0 0.0
        %568 = vmatprep.subr.mxu0 0.0
        %569 = vmatpush1.msra.mxu0 0.0
        %570 = vmatprep.subr.mxu0 0.0
        %571 = vmatpush1.msra.mxu0 0.0
        %572 = vmatprep.subr.mxu0 0.0
        %573 = vmatpush1.msra.mxu0 0.0
        %574 = vmatprep.subr.mxu0 0.0
        %575 = vmatpush1.msra.mxu0 0.0
        %576 = vmatprep.subr.mxu0 0.0
        %577 = vmatpush1.msra.mxu0 0.0
        %578 = vmatprep.subr.mxu0 0.0
        %579 = vmatpush1.msra.mxu0 0.0
        %580 = vmatprep.subr.mxu0 0.0
        %581 = vmatpush1.msra.mxu0 0.0
        %582 = vmatprep.subr.mxu0 0.0
        %583 = vmatpush1.msra.mxu0 0.0
        %584 = vmatprep.subr.mxu0 0.0
        %585 = vmatpush1.msra.mxu0 0.0
        %586 = vmatprep.subr.mxu0 0.0
        %587 = vmatpush1.msra.mxu0 0.0
        %588 = vmatprep.subr.mxu0 0.0
        %589 = vmatpush1.msra.mxu0 0.0
        %590 = vmatprep.subr.mxu0 0.0
        %591 = vmatpush1.msra.mxu0 0.0
        %592 = vmatprep.subr.mxu0 0.0
        %593 = vmatpush1.msra.mxu0 0.0
        %594 = vmatprep.subr.mxu0 0.0
        %595 = vmatpush1.msra.mxu0 0.0
        %596 = vmatprep.subr.mxu0 0.0
        %597 = vmatpush1.msra.mxu0 0.0
        %598 = vmatprep.mubr.f32.mxu0 0.0
        %599 = vmatmul.mubr.f32.gmra.mrb[0].mxu0 %v532
        %v600 = vpop.f32.mrb[0].mxu0
        %v601 = vadd.f32 0.0, %v600
        %v602 = vpop.f32.mrb[0].mxu0
        %603 = vdwg.mxu0
        %v604 = vadd.f32 %v526, %v601
        %s605 = scalar_lea.vmem %s1, 32
        %v606 = vld [vmem:[%s605] sm:$0xff]
        %s607 = scalar_lea.vmem %s256, 32 [#allocation2]
        %v608 = vld [vmem:[%s607] sm:$0xff]
        %v610 = vsel %vm302, %v606, 0
        %612 = vmatprep.subr.mxu0 0.0
        %613 = vmatpush1.msra.mxu0 %v608
        %614 = vmatprep.subr.mxu0 0.0
        %615 = vmatpush1.msra.mxu0 0.0
        %616 = vmatprep.subr.mxu0 0.0
        %617 = vmatpush1.msra.mxu0 0.0
        %618 = vmatprep.subr.mxu0 0.0
        %619 = vmatpush1.msra.mxu0 0.0
        %620 = vmatprep.subr.mxu0 0.0
        %621 = vmatpush1.msra.mxu0 0.0
        %622 = vmatprep.subr.mxu0 0.0
        %623 = vmatpush1.msra.mxu0 0.0
        %624 = vmatprep.subr.mxu0 0.0
        %625 = vmatpush1.msra.mxu0 0.0
        %626 = vmatprep.subr.mxu0 0.0
        %627 = vmatpush1.msra.mxu0 0.0
        %628 = vmatprep.subr.mxu0 0.0
        %629 = vmatpush1.msra.mxu0 0.0
        %630 = vmatprep.subr.mxu0 0.0
        %631 = vmatpush1.msra.mxu0 0.0
        %632 = vmatprep.subr.mxu0 0.0
        %633 = vmatpush1.msra.mxu0 0.0
        %634 = vmatprep.subr.mxu0 0.0
        %635 = vmatpush1.msra.mxu0 0.0
        %636 = vmatprep.subr.mxu0 0.0
        %637 = vmatpush1.msra.mxu0 0.0
        %638 = vmatprep.subr.mxu0 0.0
        %639 = vmatpush1.msra.mxu0 0.0
        %640 = vmatprep.subr.mxu0 0.0
        %641 = vmatpush1.msra.mxu0 0.0
        %642 = vmatprep.subr.mxu0 0.0
        %643 = vmatpush1.msra.mxu0 0.0
        %644 = vmatprep.subr.mxu0 0.0
        %645 = vmatpush1.msra.mxu0 0.0
        %646 = vmatprep.subr.mxu0 0.0
        %647 = vmatpush1.msra.mxu0 0.0
        %648 = vmatprep.subr.mxu0 0.0
        %649 = vmatpush1.msra.mxu0 0.0
        %650 = vmatprep.subr.mxu0 0.0
        %651 = vmatpush1.msra.mxu0 0.0
        %652 = vmatprep.subr.mxu0 0.0
        %653 = vmatpush1.msra.mxu0 0.0
        %654 = vmatprep.subr.mxu0 0.0
        %655 = vmatpush1.msra.mxu0 0.0
        %656 = vmatprep.subr.mxu0 0.0
        %657 = vmatpush1.msra.mxu0 0.0
        %658 = vmatprep.subr.mxu0 0.0
        %659 = vmatpush1.msra.mxu0 0.0
        %660 = vmatprep.subr.mxu0 0.0
        %661 = vmatpush1.msra.mxu0 0.0
        %662 = vmatprep.subr.mxu0 0.0
        %663 = vmatpush1.msra.mxu0 0.0
        %664 = vmatprep.subr.mxu0 0.0
        %665 = vmatpush1.msra.mxu0 0.0
        %666 = vmatprep.subr.mxu0 0.0
        %667 = vmatpush1.msra.mxu0 0.0
        %668 = vmatprep.subr.mxu0 0.0
        %669 = vmatpush1.msra.mxu0 0.0
        %670 = vmatprep.subr.mxu0 0.0
        %671 = vmatpush1.msra.mxu0 0.0
        %672 = vmatprep.subr.mxu0 0.0
        %673 = vmatpush1.msra.mxu0 0.0
        %674 = vmatprep.subr.mxu0 0.0
        %675 = vmatpush1.msra.mxu0 0.0
        %676 = vmatprep.mubr.f32.mxu0 0.0
        %677 = vmatmul.mubr.f32.gmra.mrb[0].mxu0 %v610
        %v678 = vpop.f32.mrb[0].mxu0
        %v679 = vadd.f32 0.0, %v678
        %v680 = vpop.f32.mrb[0].mxu0
        %681 = vdwg.mxu0
        %v682 = vadd.f32 %v604, %v679
        %s683 = scalar_lea.vmem %s1, 40
        %v684 = vld [vmem:[%s683] sm:$0xff]
        %s685 = scalar_lea.vmem %s256, 40 [#allocation2]
        %v686 = vld [vmem:[%s685] sm:$0xff]
        %v688 = vsel %vm302, %v684, 0
        %690 = vmatprep.subr.mxu0 0.0
        %691 = vmatpush1.msra.mxu0 %v686
        %692 = vmatprep.subr.mxu0 0.0
        %693 = vmatpush1.msra.mxu0 0.0
        %694 = vmatprep.subr.mxu0 0.0
        %695 = vmatpush1.msra.mxu0 0.0
        %696 = vmatprep.subr.mxu0 0.0
        %697 = vmatpush1.msra.mxu0 0.0
        %698 = vmatprep.subr.mxu0 0.0
        %699 = vmatpush1.msra.mxu0 0.0
        %700 = vmatprep.subr.mxu0 0.0
        %701 = vmatpush1.msra.mxu0 0.0
        %702 = vmatprep.subr.mxu0 0.0
        %703 = vmatpush1.msra.mxu0 0.0
        %704 = vmatprep.subr.mxu0 0.0
        %705 = vmatpush1.msra.mxu0 0.0
        %706 = vmatprep.subr.mxu0 0.0
        %707 = vmatpush1.msra.mxu0 0.0
        %708 = vmatprep.subr.mxu0 0.0
        %709 = vmatpush1.msra.mxu0 0.0
        %710 = vmatprep.subr.mxu0 0.0
        %711 = vmatpush1.msra.mxu0 0.0
        %712 = vmatprep.subr.mxu0 0.0
        %713 = vmatpush1.msra.mxu0 0.0
        %714 = vmatprep.subr.mxu0 0.0
        %715 = vmatpush1.msra.mxu0 0.0
        %716 = vmatprep.subr.mxu0 0.0
        %717 = vmatpush1.msra.mxu0 0.0
        %718 = vmatprep.subr.mxu0 0.0
        %719 = vmatpush1.msra.mxu0 0.0
        %720 = vmatprep.subr.mxu0 0.0
        %721 = vmatpush1.msra.mxu0 0.0
        %722 = vmatprep.subr.mxu0 0.0
        %723 = vmatpush1.msra.mxu0 0.0
        %724 = vmatprep.subr.mxu0 0.0
        %725 = vmatpush1.msra.mxu0 0.0
        %726 = vmatprep.subr.mxu0 0.0
        %727 = vmatpush1.msra.mxu0 0.0
        %728 = vmatprep.subr.mxu0 0.0
        %729 = vmatpush1.msra.mxu0 0.0
        %730 = vmatprep.subr.mxu0 0.0
        %731 = vmatpush1.msra.mxu0 0.0
        %732 = vmatprep.subr.mxu0 0.0
        %733 = vmatpush1.msra.mxu0 0.0
        %734 = vmatprep.subr.mxu0 0.0
        %735 = vmatpush1.msra.mxu0 0.0
        %736 = vmatprep.subr.mxu0 0.0
        %737 = vmatpush1.msra.mxu0 0.0
        %738 = vmatprep.subr.mxu0 0.0
        %739 = vmatpush1.msra.mxu0 0.0
        %740 = vmatprep.subr.mxu0 0.0
        %741 = vmatpush1.msra.mxu0 0.0
        %742 = vmatprep.subr.mxu0 0.0
        %743 = vmatpush1.msra.mxu0 0.0
        %744 = vmatprep.subr.mxu0 0.0
        %745 = vmatpush1.msra.mxu0 0.0
        %746 = vmatprep.subr.mxu0 0.0
        %747 = vmatpush1.msra.mxu0 0.0
        %748 = vmatprep.subr.mxu0 0.0
        %749 = vmatpush1.msra.mxu0 0.0
        %750 = vmatprep.subr.mxu0 0.0
        %751 = vmatpush1.msra.mxu0 0.0
        %752 = vmatprep.subr.mxu0 0.0
        %753 = vmatpush1.msra.mxu0 0.0
        %754 = vmatprep.mubr.f32.mxu0 0.0
        %755 = vmatmul.mubr.f32.gmra.mrb[0].mxu0 %v688
        %v756 = vpop.f32.mrb[0].mxu0
        %v757 = vadd.f32 0.0, %v756
        %v758 = vpop.f32.mrb[0].mxu0
        %759 = vdwg.mxu0
        %v760 = vadd.f32 %v682, %v757
        %s761 = scalar_lea.vmem %s1, 48
        %v762 = vld [vmem:[%s761] sm:$0xff]
        %s763 = scalar_lea.vmem %s256, 48 [#allocation2]
        %v764 = vld [vmem:[%s763] sm:$0xff]
        %v766 = vsel %vm302, %v762, 0
        %768 = vmatprep.subr.mxu0 0.0
        %769 = vmatpush1.msra.mxu0 %v764
        %770 = vmatprep.subr.mxu0 0.0
        %771 = vmatpush1.msra.mxu0 0.0
        %772 = vmatprep.subr.mxu0 0.0
        %773 = vmatpush1.msra.mxu0 0.0
        %774 = vmatprep.subr.mxu0 0.0
        %775 = vmatpush1.msra.mxu0 0.0
        %776 = vmatprep.subr.mxu0 0.0
        %777 = vmatpush1.msra.mxu0 0.0
        %778 = vmatprep.subr.mxu0 0.0
        %779 = vmatpush1.msra.mxu0 0.0
        %780 = vmatprep.subr.mxu0 0.0
        %781 = vmatpush1.msra.mxu0 0.0
        %782 = vmatprep.subr.mxu0 0.0
        %783 = vmatpush1.msra.mxu0 0.0
        %784 = vmatprep.subr.mxu0 0.0
        %785 = vmatpush1.msra.mxu0 0.0
        %786 = vmatprep.subr.mxu0 0.0
        %787 = vmatpush1.msra.mxu0 0.0
        %788 = vmatprep.subr.mxu0 0.0
        %789 = vmatpush1.msra.mxu0 0.0
        %790 = vmatprep.subr.mxu0 0.0
        %791 = vmatpush1.msra.mxu0 0.0
        %792 = vmatprep.subr.mxu0 0.0
        %793 = vmatpush1.msra.mxu0 0.0
        %794 = vmatprep.subr.mxu0 0.0
        %795 = vmatpush1.msra.mxu0 0.0
        %796 = vmatprep.subr.mxu0 0.0
        %797 = vmatpush1.msra.mxu0 0.0
        %798 = vmatprep.subr.mxu0 0.0
        %799 = vmatpush1.msra.mxu0 0.0
        %800 = vmatprep.subr.mxu0 0.0
        %801 = vmatpush1.msra.mxu0 0.0
        %802 = vmatprep.subr.mxu0 0.0
        %803 = vmatpush1.msra.mxu0 0.0
        %804 = vmatprep.subr.mxu0 0.0
        %805 = vmatpush1.msra.mxu0 0.0
        %806 = vmatprep.subr.mxu0 0.0
        %807 = vmatpush1.msra.mxu0 0.0
        %808 = vmatprep.subr.mxu0 0.0
        %809 = vmatpush1.msra.mxu0 0.0
        %810 = vmatprep.subr.mxu0 0.0
        %811 = vmatpush1.msra.mxu0 0.0
        %812 = vmatprep.subr.mxu0 0.0
        %813 = vmatpush1.msra.mxu0 0.0
        %814 = vmatprep.subr.mxu0 0.0
        %815 = vmatpush1.msra.mxu0 0.0
        %816 = vmatprep.subr.mxu0 0.0
        %817 = vmatpush1.msra.mxu0 0.0
        %818 = vmatprep.subr.mxu0 0.0
        %819 = vmatpush1.msra.mxu0 0.0
        %820 = vmatprep.subr.mxu0 0.0
        %821 = vmatpush1.msra.mxu0 0.0
        %822 = vmatprep.subr.mxu0 0.0
        %823 = vmatpush1.msra.mxu0 0.0
        %824 = vmatprep.subr.mxu0 0.0
        %825 = vmatpush1.msra.mxu0 0.0
        %826 = vmatprep.subr.mxu0 0.0
        %827 = vmatpush1.msra.mxu0 0.0
        %828 = vmatprep.subr.mxu0 0.0
        %829 = vmatpush1.msra.mxu0 0.0
        %830 = vmatprep.subr.mxu0 0.0
        %831 = vmatpush1.msra.mxu0 0.0
        %832 = vmatprep.mubr.f32.mxu0 0.0
        %833 = vmatmul.mubr.f32.gmra.mrb[0].mxu0 %v766
        %v834 = vpop.f32.mrb[0].mxu0
        %v835 = vadd.f32 0.0, %v834
        %v836 = vpop.f32.mrb[0].mxu0
        %837 = vdwg.mxu0
        %v838 = vadd.f32 %v760, %v835
        %s839 = scalar_lea.vmem %s1, 56
        %v840 = vld [vmem:[%s839] sm:$0xff]
        %s841 = scalar_lea.vmem %s256, 56 [#allocation2]
        %v842 = vld [vmem:[%s841] sm:$0xff]
        %v844 = vsel %vm302, %v840, 0
        %846 = vmatprep.subr.mxu0 0.0
        %847 = vmatpush1.msra.mxu0 %v842
        %848 = vmatprep.subr.mxu0 0.0
        %849 = vmatpush1.msra.mxu0 0.0
        %850 = vmatprep.subr.mxu0 0.0
        %851 = vmatpush1.msra.mxu0 0.0
        %852 = vmatprep.subr.mxu0 0.0
        %853 = vmatpush1.msra.mxu0 0.0
        %854 = vmatprep.subr.mxu0 0.0
        %855 = vmatpush1.msra.mxu0 0.0
        %856 = vmatprep.subr.mxu0 0.0
        %857 = vmatpush1.msra.mxu0 0.0
        %858 = vmatprep.subr.mxu0 0.0
        %859 = vmatpush1.msra.mxu0 0.0
        %860 = vmatprep.subr.mxu0 0.0
        %861 = vmatpush1.msra.mxu0 0.0
        %862 = vmatprep.subr.mxu0 0.0
        %863 = vmatpush1.msra.mxu0 0.0
        %864 = vmatprep.subr.mxu0 0.0
        %865 = vmatpush1.msra.mxu0 0.0
        %866 = vmatprep.subr.mxu0 0.0
        %867 = vmatpush1.msra.mxu0 0.0
        %868 = vmatprep.subr.mxu0 0.0
        %869 = vmatpush1.msra.mxu0 0.0
        %870 = vmatprep.subr.mxu0 0.0
        %871 = vmatpush1.msra.mxu0 0.0
        %872 = vmatprep.subr.mxu0 0.0
        %873 = vmatpush1.msra.mxu0 0.0
        %874 = vmatprep.subr.mxu0 0.0
        %875 = vmatpush1.msra.mxu0 0.0
        %876 = vmatprep.subr.mxu0 0.0
        %877 = vmatpush1.msra.mxu0 0.0
        %878 = vmatprep.subr.mxu0 0.0
        %879 = vmatpush1.msra.mxu0 0.0
        %880 = vmatprep.subr.mxu0 0.0
        %881 = vmatpush1.msra.mxu0 0.0
        %882 = vmatprep.subr.mxu0 0.0
        %883 = vmatpush1.msra.mxu0 0.0
        %884 = vmatprep.subr.mxu0 0.0
        %885 = vmatpush1.msra.mxu0 0.0
        %886 = vmatprep.subr.mxu0 0.0
        %887 = vmatpush1.msra.mxu0 0.0
        %888 = vmatprep.subr.mxu0 0.0
        %889 = vmatpush1.msra.mxu0 0.0
        %890 = vmatprep.subr.mxu0 0.0
        %891 = vmatpush1.msra.mxu0 0.0
        %892 = vmatprep.subr.mxu0 0.0
        %893 = vmatpush1.msra.mxu0 0.0
        %894 = vmatprep.subr.mxu0 0.0
        %895 = vmatpush1.msra.mxu0 0.0
        %896 = vmatprep.subr.mxu0 0.0
        %897 = vmatpush1.msra.mxu0 0.0
        %898 = vmatprep.subr.mxu0 0.0
        %899 = vmatpush1.msra.mxu0 0.0
        %900 = vmatprep.subr.mxu0 0.0
        %901 = vmatpush1.msra.mxu0 0.0
        %902 = vmatprep.subr.mxu0 0.0
        %903 = vmatpush1.msra.mxu0 0.0
        %904 = vmatprep.subr.mxu0 0.0
        %905 = vmatpush1.msra.mxu0 0.0
        %906 = vmatprep.subr.mxu0 0.0
        %907 = vmatpush1.msra.mxu0 0.0
        %908 = vmatprep.subr.mxu0 0.0
        %909 = vmatpush1.msra.mxu0 0.0
        %910 = vmatprep.mubr.f32.mxu0 0.0
        %911 = vmatmul.mubr.f32.gmra.mrb[0].mxu0 %v844
        %v912 = vpop.f32.mrb[0].mxu0
        %v913 = vadd.f32 0.0, %v912
        %v914 = vpop.f32.mrb[0].mxu0
        %915 = vdwg.mxu0
        %v916 = vadd.f32 %v838, %v913
        %s917 = scalar_lea.vmem %s1, 64
        %v918 = vld [vmem:[%s917] sm:$0xff]
        %s919 = scalar_lea.vmem %s256, 64 [#allocation2]
        %v920 = vld [vmem:[%s919] sm:$0xff]
        %v922 = vsel %vm302, %v918, 0
        %924 = vmatprep.subr.mxu0 0.0
        %925 = vmatpush1.msra.mxu0 %v920
        %926 = vmatprep.subr.mxu0 0.0
        %927 = vmatpush1.msra.mxu0 0.0
        %928 = vmatprep.subr.mxu0 0.0
        %929 = vmatpush1.msra.mxu0 0.0
        %930 = vmatprep.subr.mxu0 0.0
        %931 = vmatpush1.msra.mxu0 0.0
        %932 = vmatprep.subr.mxu0 0.0
        %933 = vmatpush1.msra.mxu0 0.0
        %934 = vmatprep.subr.mxu0 0.0
        %935 = vmatpush1.msra.mxu0 0.0
        %936 = vmatprep.subr.mxu0 0.0
        %937 = vmatpush1.msra.mxu0 0.0
        %938 = vmatprep.subr.mxu0 0.0
        %939 = vmatpush1.msra.mxu0 0.0
        %940 = vmatprep.subr.mxu0 0.0
        %941 = vmatpush1.msra.mxu0 0.0
        %942 = vmatprep.subr.mxu0 0.0
        %943 = vmatpush1.msra.mxu0 0.0
        %944 = vmatprep.subr.mxu0 0.0
        %945 = vmatpush1.msra.mxu0 0.0
        %946 = vmatprep.subr.mxu0 0.0
        %947 = vmatpush1.msra.mxu0 0.0
        %948 = vmatprep.subr.mxu0 0.0
        %949 = vmatpush1.msra.mxu0 0.0
        %950 = vmatprep.subr.mxu0 0.0
        %951 = vmatpush1.msra.mxu0 0.0
        %952 = vmatprep.subr.mxu0 0.0
        %953 = vmatpush1.msra.mxu0 0.0
        %954 = vmatprep.subr.mxu0 0.0
        %955 = vmatpush1.msra.mxu0 0.0
        %956 = vmatprep.subr.mxu0 0.0
        %957 = vmatpush1.msra.mxu0 0.0
        %958 = vmatprep.subr.mxu0 0.0
        %959 = vmatpush1.msra.mxu0 0.0
        %960 = vmatprep.subr.mxu0 0.0
        %961 = vmatpush1.msra.mxu0 0.0
        %962 = vmatprep.subr.mxu0 0.0
        %963 = vmatpush1.msra.mxu0 0.0
        %964 = vmatprep.subr.mxu0 0.0
        %965 = vmatpush1.msra.mxu0 0.0
        %966 = vmatprep.subr.mxu0 0.0
        %967 = vmatpush1.msra.mxu0 0.0
        %968 = vmatprep.subr.mxu0 0.0
        %969 = vmatpush1.msra.mxu0 0.0
        %970 = vmatprep.subr.mxu0 0.0
        %971 = vmatpush1.msra.mxu0 0.0
        %972 = vmatprep.subr.mxu0 0.0
        %973 = vmatpush1.msra.mxu0 0.0
        %974 = vmatprep.subr.mxu0 0.0
        %975 = vmatpush1.msra.mxu0 0.0
        %976 = vmatprep.subr.mxu0 0.0
        %977 = vmatpush1.msra.mxu0 0.0
        %978 = vmatprep.subr.mxu0 0.0
        %979 = vmatpush1.msra.mxu0 0.0
        %980 = vmatprep.subr.mxu0 0.0
        %981 = vmatpush1.msra.mxu0 0.0
        %982 = vmatprep.subr.mxu0 0.0
        %983 = vmatpush1.msra.mxu0 0.0
        %984 = vmatprep.subr.mxu0 0.0
        %985 = vmatpush1.msra.mxu0 0.0
        %986 = vmatprep.subr.mxu0 0.0
        %987 = vmatpush1.msra.mxu0 0.0
        %988 = vmatprep.mubr.f32.mxu0 0.0
        %989 = vmatmul.mubr.f32.gmra.mrb[0].mxu0 %v922
        %v990 = vpop.f32.mrb[0].mxu0
        %v991 = vadd.f32 0.0, %v990
        %v992 = vpop.f32.mrb[0].mxu0
        %993 = vdwg.mxu0
        %v994 = vadd.f32 %v916, %v991
        %v995 = vld [vmem:[%s2] sm:$0xff]
        %997 = vset.pattern.permute.xlu0 0
        %998 = vperm.xlu0 %997, %v995
        %v999 = vpop.permute.xlu0 %998
        %v1001 = vadd.f32 %v994, %v999
        %v1002 = vmax.f32 %v1001, 0.0
        %vm1003 = vcmask 523264
        %1004 = vst.msk [vmem:[%s291] sm:$0xff] %vm1003, %v1002
        %p1005 = scmp.eq.s32.totalorder %s21, 0
        // Predicated region
        $region71: #{dblock_forward.5} parent=65 // pred_check
          %p1006 = pneg %p1005
        $region72: #{dblock_forward.5} parent=65 // pred_check_branch
          %1008 = sbr.rel (%p1006) target = $region74
        $region73: #{dblock_forward.5} parent=65 // pred_region
          %vm1009 = vcmask 7168
          %1010 = vst.msk [vmem:[%s295] sm:$0xff] %vm1009, 0.0
        $region74: #{dblock_forward.5} parent=65 // pred_fallthru
          _
        %v1011 = vld [vmem:[%s295] sm:$0xff]
        %v1012 = vsel %vm1003, %v1002, 0.0
        %1013 = vadd.xlane.f32.xlu0 %v1012
        %v1014 = vpop.xlane.xlu0 %1013
        %v1015 = vadd.f32 %v1011, %v1014
        %vm1016 = vcmask 7168
        %1017 = vst.msk [vmem:[%s295] sm:$0xff] %vm1016, %v1015
        %p1018 = scmp.lt.s32.totalorder %s20, 1
        %s1019 = scalar_select %p1018, %s20, 1
        %p1020 = scmp.lt.s32.totalorder %s21, 0
        %s1021 = scalar_select %p1020, %s21, 0
        %s1022 = sadd.s32 %s1021, %s1019
        %s1023 = smul.addr %s1022, 8
        %s1024 = scalar_lea.vmem %s3, %s1023
        %p1025 = scmp.lt.s32.totalorder %s20, 1
        %s1026 = scalar_select %p1025, %s20, 1
        %s1027 = smul.addr %s1026, 8
        %s1028 = scalar_lea.vmem %s4, %s1027
        // Predicated region
        $region75: #{dblock_forward.5} parent=65 // pred_check
          %p1029 = pneg %p118
        $region76: #{dblock_forward.5} parent=65 // pred_check_branch
          %1031 = sbr.rel (%p1029) target = $region78
        $region77: #{dblock_forward.5} parent=65 // pred_region
          _
        $region78: #{dblock_forward.5} parent=65 // pred_fallthru
          _
        // Predicated region
        $region79: #{dblock_forward.5} parent=65 // pred_check
          %p1032 = pneg %p144
        $region80: #{dblock_forward.5} parent=65 // pred_check_branch
          %1034 = sbr.rel (%p1032) target = $region82
        $region81: #{dblock_forward.5} parent=65 // pred_region
          _
        $region82: #{dblock_forward.5} parent=65 // pred_fallthru
          _
      $region66: #{dblock_forward.5} parent=5 // pred_fallthru
        _
      %p1035 = scmp.le.s32.totalorder 2, %s11
      // Predicated region
      $region83: #{dblock_forward.5} parent=5 // pred_check
        %p1036 = pneg %p1035
      $region84: #{dblock_forward.5} parent=5 // pred_check_branch
        %1038 = sbr.rel (%p1036) target = $region86
      $region85: #{dblock_forward.5} parent=5 // pred_region
        %s1039 = ssub.s32 %s11, 2
        // Predicated region
        $region87: #{dblock_forward.5} parent=85 // pred_check
          %p1040 = pneg %p124
        $region88: #{dblock_forward.5} parent=85 // pred_check_branch
          %1042 = sbr.rel (%p1040) target = $region90
        $region89: #{dblock_forward.5} parent=85 // pred_region
          %p1043 = scmp.lt.s32.totalorder %s22, 1
          %s1044 = scalar_select %p1043, %s22, 1
          %p1045 = scmp.lt.s32.totalorder %s23, 0
          %s1046 = scalar_select %p1045, %s23, 0
          %s1047 = sadd.s32 %s1046, %s1044
          %s1048 = smul.addr %s1047, 8
          %s1049 = scalar_lea.vmem %s3, %s1048
        $region90: #{dblock_forward.5} parent=85 // pred_fallthru
          _
        // Predicated region
        $region91: #{dblock_forward.5} parent=85 // pred_check
          %p1050 = pneg %p150
        $region92: #{dblock_forward.5} parent=85 // pred_check_branch
          %1052 = sbr.rel (%p1050) target = $region94
        $region93: #{dblock_forward.5} parent=85 // pred_region
          %p1053 = scmp.lt.s32.totalorder %s22, 1
          %s1054 = scalar_select %p1053, %s22, 1
          %s1055 = smul.addr %s1054, 8
          %s1056 = scalar_lea.vmem %s4, %s1055
        $region94: #{dblock_forward.5} parent=85 // pred_fallthru
          _
      $region86: #{dblock_forward.5} parent=5 // pred_fallthru
        _
    $region6: #{dblock_forward.5} parent=1 // loop_footer
      %s15 = sadd.s32 1, %s11
    $region7: #{dblock_forward.5} parent=1 // loop_footer_branch
      %10 = sbr.rel target = $region3
    $region8: #{dblock_forward.5} parent=1 // loop_exit
      _

</llo_original>
